<compile_context>
chip_gen: v7x
topology: tpu7x:2x2x1
jax: 0.10.0
libtpu: 0.0.40
codegen_flags: <defaults>
</compile_context>

<pallas_src>
import jax
import jax.numpy as jnp
from jax import lax
from jax.experimental import pallas as pl
from jax.experimental.pallas import tpu as pltpu


def _round_up(x, m):
    return ((x + m - 1) // m) * m


def _make_rnn_kernel(seq_len, block_t, t_pad):
    """Build the kernel body; seq_len/block_t/t_pad are static Python ints."""
    needs_mask = (t_pad != seq_len)

    def kernel(x_ref,                       # (TB, B_pad, D_pad)  bf16, time-major
               w0_ref, b0_ref,              # (D_pad+H_pad, H_pad) bf16, (1, H_pad) f32
               w1_ref, b1_ref,              # (2*H_pad,  H_pad)   bf16, (1, H_pad) f32
               wfc_ref, bfc_ref,            # (H_pad, O_pad)      bf16, (1, O_pad) f32
               out_ref,                     # (B_pad, O_pad) f32
               h0_sc, h1_sc):               # (B_pad, H_pad) f32 scratch per layer
        blk = pl.program_id(0)

        # zero-init hidden states (PyTorch default h0 = zeros)
        @pl.when(blk == 0)
        def _():
            h0_sc[...] = jnp.zeros_like(h0_sc)
            h1_sc[...] = jnp.zeros_like(h1_sc)

        def step(s, carry):
            h0, h1 = carry                              # (B_pad, H_pad) f32
            x_t = x_ref[s]                              # (B_pad, D_pad) bf16

            # layer 0: tanh([x_t, h0] @ [W_ih0^T ; W_hh0^T] + (b_ih0 + b_hh0))
            in0 = jnp.concatenate([x_t, h0.astype(jnp.bfloat16)], axis=-1)
            h0_new = jnp.tanh(
                jnp.dot(in0, w0_ref[...], preferred_element_type=jnp.float32)
                + b0_ref[...]
            )

            # layer 1 takes layer 0's output as its input
            in1 = jnp.concatenate(
                [h0_new.astype(jnp.bfloat16), h1.astype(jnp.bfloat16)], axis=-1)
            h1_new = jnp.tanh(
                jnp.dot(in1, w1_ref[...], preferred_element_type=jnp.float32)
                + b1_ref[...]
            )

            if needs_mask:
                # steps beyond the true sequence length must not move the state
                t = blk * block_t + s
                valid = t < seq_len
                h0_new = jnp.where(valid, h0_new, h0)
                h1_new = jnp.where(valid, h1_new, h1)
            return (h0_new, h1_new)

        h0, h1 = lax.fori_loop(0, block_t, step,
                               (h0_sc[...], h1_sc[...]), unroll=True)
        h0_sc[...] = h0
        h1_sc[...] = h1

        # last grid step: fc on the top-layer hidden state (== out[:, -1, :])
        @pl.when(blk == pl.num_programs(0) - 1)
        def _():
            out_ref[...] = (
                jnp.dot(h1.astype(jnp.bfloat16), wfc_ref[...],
                        preferred_element_type=jnp.float32)
                + bfc_ref[...]
            ).astype(out_ref.dtype)

    return kernel


def simple_rnn_forward(x, params, block_t=32):
    """x: (B, T, D_in) float32. Returns (B, O) float32."""
    B, T, D_in = x.shape
    H = params["w_hh0"].shape[0]
    O = params["w_fc"].shape[0]

    # hardware-tile padding: sublane (8) for batch, lane (128) for features
    B_pad = _round_up(B, 8)
    D_pad = _round_up(D_in, 128)
    H_pad = _round_up(H, 128)
    O_pad = _round_up(O, 128)

    # time blocking: whole sequence in one grid step when it is short,
    # otherwise TB steps per grid iteration (TB multiple of 8)
    if T <= block_t:
        TB, T_pad = T, T
    else:
        TB = block_t
        T_pad = _round_up(T, TB)

    # time-major, padded, bf16 (each step's slice is a contiguous (8,128) tile)
    x_tm = jnp.transpose(x, (1, 0, 2)).astype(jnp.bfloat16)
    x_p = jnp.zeros((T_pad, B_pad, D_pad), jnp.bfloat16)
    x_p = x_p.at[:T, :B, :D_in].set(x_tm)

    def pad2(w, r, c):
        out = jnp.zeros((r, c), jnp.float32)
        return out.at[:w.shape[0], :w.shape[1]].set(w)

    # fused per-layer weights: [x_t, h_prev] @ [W_ih^T ; W_hh^T]
    w0 = jnp.concatenate(
        [pad2(params["w_ih0"].T, D_pad, H_pad),
         pad2(params["w_hh0"].T, H_pad, H_pad)], axis=0).astype(jnp.bfloat16)
    w1 = jnp.concatenate(
        [pad2(params["w_ih1"].T, H_pad, H_pad),
         pad2(params["w_hh1"].T, H_pad, H_pad)], axis=0).astype(jnp.bfloat16)
    wfc = pad2(params["w_fc"].T, H_pad, O_pad).astype(jnp.bfloat16)

    # pre-folded biases (f32)
    b0 = jnp.zeros((1, H_pad), jnp.float32).at[0, :H].set(
        params["b_ih0"] + params["b_hh0"])
    b1 = jnp.zeros((1, H_pad), jnp.float32).at[0, :H].set(
        params["b_ih1"] + params["b_hh1"])
    bfc = jnp.zeros((1, O_pad), jnp.float32).at[0, :O].set(params["b_fc"])

    kernel = _make_rnn_kernel(T, TB, T_pad)

    full = lambda shape: pl.BlockSpec(shape, lambda i: tuple(0 for _ in shape))

    out_p = pl.pallas_call(
        kernel,
        out_shape=jax.ShapeDtypeStruct((B_pad, O_pad), jnp.float32),
        grid_spec=pltpu.PrefetchScalarGridSpec(
            num_scalar_prefetch=0,
            grid=(T_pad // TB,),
            in_specs=[
                pl.BlockSpec((TB, B_pad, D_pad), lambda i: (i, 0, 0)),  # x block
                full((D_pad + H_pad, H_pad)), full((1, H_pad)),         # layer 0
                full((2 * H_pad, H_pad)), full((1, H_pad)),             # layer 1
                full((H_pad, O_pad)), full((1, O_pad)),                 # fc head
            ],
            out_specs=pl.BlockSpec((B_pad, O_pad), lambda i: (0, 0)),
            scratch_shapes=[
                pltpu.VMEM((B_pad, H_pad), jnp.float32),   # layer-0 hidden
                pltpu.VMEM((B_pad, H_pad), jnp.float32),   # layer-1 hidden
            ],
        ),
        compiler_params=pltpu.CompilerParams(
            dimension_semantics=("arbitrary",),   # sequential time recurrence
        ),
    )(x_p, w0, b0, w1, b1, wfc, bfc)

    return out_p[:B, :O]


def _reference_forward(x, params):
    """Pure-JAX f32 reference replicating torch.nn.RNN(num_layers=2, batch_first=True) + Linear."""
    B, T, _ = x.shape
    H = params["w_hh0"].shape[0]
    h0 = jnp.zeros((B, H), jnp.float32)
    h1 = jnp.zeros((B, H), jnp.float32)
    for t in range(T):
        x_t = x[:, t, :]
        h0 = jnp.tanh(x_t @ params["w_ih0"].T + params["b_ih0"]
                      + h0 @ params["w_hh0"].T + params["b_hh0"])
        h1 = jnp.tanh(h0 @ params["w_ih1"].T + params["b_ih1"]
                      + h1 @ params["w_hh1"].T + params["b_hh1"])
    return h1 @ params["w_fc"].T + params["b_fc"]


def init_params(key, input_size, hidden_size, output_size):
    """Deterministic synthetic init (PyTorch-style uniform(-1/sqrt(H), 1/sqrt(H)))."""
    ks = jax.random.split(key, 12)
    s = 1.0 / jnp.sqrt(hidden_size)
    u = lambda k, shape: jax.random.uniform(k, shape, jnp.float32, -s, s)
    return {
        "w_ih0": u(ks[0], (hidden_size, input_size)),
        "w_hh0": u(ks[1], (hidden_size, hidden_size)),
        "b_ih0": u(ks[2], (hidden_size,)),
        "b_hh0": u(ks[3], (hidden_size,)),
        "w_ih1": u(ks[4], (hidden_size, hidden_size)),
        "w_hh1": u(ks[5], (hidden_size, hidden_size)),
        "b_ih1": u(ks[6], (hidden_size,)),
        "b_hh1": u(ks[7], (hidden_size,)),
        "w_fc": u(ks[8], (output_size, hidden_size)),
        "b_fc": u(ks[9], (output_size,)),
    }


if __name__ == "__main__":
    batch = 2
    seq = 8
    input_size = 16
    hidden_size = 64     # matches the module spec (hidden_size = 64, num_layers = 2)
    output_size = 8

    key = jax.random.PRNGKey(0)
    k_x, k_p = jax.random.split(key)
    x = jax.random.normal(k_x, (batch, seq, input_size), jnp.float32)
    params = init_params(k_p, input_size, hidden_size, output_size)

    out = simple_rnn_forward(x, params)
    out = jax.block_until_ready(out)

    ref = _reference_forward(x, params)
    assert out.shape == (batch, output_size)
    # bf16 weights/MXU inputs (f32 accumulation) -> widened tolerance vs f32 reference
    assert jnp.allclose(out, ref, atol=5e-2, rtol=5e-2), (
        f"max abs err {jnp.max(jnp.abs(out - ref))}")

    print("KERNEL_OK")
</pallas_src>

<mosaic_0001>
module attributes {stable_mosaic.version = 11 : i64} {
  func.func @kernel(%arg0: i32, %arg1: memref<8x8x128xbf16, #tpu.memory_space<vmem>>, %arg2: memref<256x128xbf16, #tpu.memory_space<vmem>>, %arg3: memref<1x128xf32, #tpu.memory_space<vmem>>, %arg4: memref<256x128xbf16, #tpu.memory_space<vmem>>, %arg5: memref<1x128xf32, #tpu.memory_space<vmem>>, %arg6: memref<128x128xbf16, #tpu.memory_space<vmem>>, %arg7: memref<1x128xf32, #tpu.memory_space<vmem>>, %arg8: memref<8x128xf32, #tpu.memory_space<vmem>>, %arg9: memref<8x128xf32, #tpu.memory_space<vmem>>, %arg10: memref<8x128xf32, #tpu.memory_space<vmem>>) attributes {dimension_semantics = [#tpu.dimension_semantics<arbitrary>], iteration_bounds = array<i64: 1>, scalar_prefetch = 0 : i64, scratch_operands = 2 : i64, tpu.core_type = #tpu.core_type<tc>, window_params = [{transform_indices = @transform_0, window_bounds = array<i64: 8, 8, 128>}, {pipeline_mode = #tpu.pipeline_mode<synchronous>, transform_indices = @transform_1, window_bounds = array<i64: 256, 128>}, {pipeline_mode = #tpu.pipeline_mode<synchronous>, transform_indices = @transform_2, window_bounds = array<i64: 1, 128>}, {pipeline_mode = #tpu.pipeline_mode<synchronous>, transform_indices = @transform_3, window_bounds = array<i64: 256, 128>}, {pipeline_mode = #tpu.pipeline_mode<synchronous>, transform_indices = @transform_4, window_bounds = array<i64: 1, 128>}, {pipeline_mode = #tpu.pipeline_mode<synchronous>, transform_indices = @transform_5, window_bounds = array<i64: 128, 128>}, {pipeline_mode = #tpu.pipeline_mode<synchronous>, transform_indices = @transform_6, window_bounds = array<i64: 1, 128>}, {pipeline_mode = #tpu.pipeline_mode<synchronous>, transform_indices = @transform_7, window_bounds = array<i64: 8, 128>}]} {
    %c0_i32 = arith.constant 0 : i32
    %0 = arith.cmpi eq, %arg0, %c0_i32 : i32
    %1 = arith.extui %0 : i1 to i32
    %c0_i32_0 = arith.constant 0 : i32
    %2 = arith.cmpi ne, %1, %c0_i32_0 : i32
    scf.if %2 {
      %cst_106 = arith.constant 0.000000e+00 : f32
      %170 = vector.broadcast %cst_106 : f32 to vector<8x128xf32>
      %c0_107 = arith.constant 0 : index
      %c0_108 = arith.constant 0 : index
      %171 = vector.load %arg9[%c0_107, %c0_108] : memref<8x128xf32, #tpu.memory_space<vmem>>, vector<8x128xf32>
      tpu.vector_store %arg9[%c0_107, %c0_108], %170 {strides = array<i32>} : memref<8x128xf32, #tpu.memory_space<vmem>>, vector<8x128xf32>,
      %cst_109 = arith.constant 0.000000e+00 : f32
      %172 = vector.broadcast %cst_109 : f32 to vector<8x128xf32>
      %c0_110 = arith.constant 0 : index
      %c0_111 = arith.constant 0 : index
      %173 = vector.load %arg10[%c0_110, %c0_111] : memref<8x128xf32, #tpu.memory_space<vmem>>, vector<8x128xf32>
      tpu.vector_store %arg10[%c0_110, %c0_111], %172 {strides = array<i32>} : memref<8x128xf32, #tpu.memory_space<vmem>>, vector<8x128xf32>,
    } else {
    }
    %c0 = arith.constant 0 : index
    %c0_1 = arith.constant 0 : index
    %3 = vector.load %arg9[%c0, %c0_1] : memref<8x128xf32, #tpu.memory_space<vmem>>, vector<8x128xf32>
    %c0_2 = arith.constant 0 : index
    %c0_3 = arith.constant 0 : index
    %4 = vector.load %arg10[%c0_2, %c0_3] : memref<8x128xf32, #tpu.memory_space<vmem>>, vector<8x128xf32>
    %c0_i32_4 = arith.constant 0 : i32
    %5 = arith.index_cast %c0_i32_4 : i32 to index
    %c0_5 = arith.constant 0 : index
    %c0_6 = arith.constant 0 : index
    %6 = vector.load %arg1[%5, %c0_5, %c0_6] : memref<8x8x128xbf16, #tpu.memory_space<vmem>>, vector<1x8x128xbf16>
    %7 = vector.shape_cast %6 : vector<1x8x128xbf16> to vector<8x128xbf16>
    %8 = arith.truncf %3 : vector<8x128xf32> to vector<8x128xbf16>
    %9 = tpu.concatenate %7, %8 in 1 : vector<8x128xbf16>, vector<8x128xbf16> -> vector<8x256xbf16>
    %c0_7 = arith.constant 0 : index
    %c0_8 = arith.constant 0 : index
    %10 = vector.load %arg2[%c0_7, %c0_8] : memref<256x128xbf16, #tpu.memory_space<vmem>>, vector<256x128xbf16>
    %cst = arith.constant dense<0.000000e+00> : vector<8x128xf32>
    %11 = tpu.matmul %9, %10, %cst {dimension_numbers = #tpu.dot_dimension_numbers<[1], [0], [0], [1], [0, 0, 1, 1], [], []>} : vector<8x256xbf16>, vector<256x128xbf16>, vector<8x128xf32> -> vector<8x128xf32>
    %c0_9 = arith.constant 0 : index
    %c0_10 = arith.constant 0 : index
    %12 = vector.load %arg3[%c0_9, %c0_10] : memref<1x128xf32, #tpu.memory_space<vmem>>, vector<1x128xf32>
    %13 = vector.broadcast %12 : vector<1x128xf32> to vector<8x128xf32>
    %14 = arith.addf %11, %13 : vector<8x128xf32>
    %15 = math.tanh %14 : vector<8x128xf32>
    %16 = arith.truncf %15 : vector<8x128xf32> to vector<8x128xbf16>
    %17 = arith.truncf %4 : vector<8x128xf32> to vector<8x128xbf16>
    %18 = tpu.concatenate %16, %17 in 1 : vector<8x128xbf16>, vector<8x128xbf16> -> vector<8x256xbf16>
    %c0_11 = arith.constant 0 : index
    %c0_12 = arith.constant 0 : index
    %19 = vector.load %arg4[%c0_11, %c0_12] : memref<256x128xbf16, #tpu.memory_space<vmem>>, vector<256x128xbf16>
    %cst_13 = arith.constant dense<0.000000e+00> : vector<8x128xf32>
    %20 = tpu.matmul %18, %19, %cst_13 {dimension_numbers = #tpu.dot_dimension_numbers<[1], [0], [0], [1], [0, 0, 1, 1], [], []>} : vector<8x256xbf16>, vector<256x128xbf16>, vector<8x128xf32> -> vector<8x128xf32>
    %c0_14 = arith.constant 0 : index
    %c0_15 = arith.constant 0 : index
    %21 = vector.load %arg5[%c0_14, %c0_15] : memref<1x128xf32, #tpu.memory_space<vmem>>, vector<1x128xf32>
    %22 = vector.broadcast %21 : vector<1x128xf32> to vector<8x128xf32>
    %23 = arith.addf %20, %22 : vector<8x128xf32>
    %24 = math.tanh %23 : vector<8x128xf32>
    %c1_i32 = arith.constant 1 : i32
    %25 = arith.index_cast %c1_i32 : i32 to index
    %c0_16 = arith.constant 0 : index
    %c0_17 = arith.constant 0 : index
    %26 = vector.load %arg1[%25, %c0_16, %c0_17] : memref<8x8x128xbf16, #tpu.memory_space<vmem>>, vector<1x8x128xbf16>
    %27 = vector.shape_cast %26 : vector<1x8x128xbf16> to vector<8x128xbf16>
    %28 = arith.truncf %15 : vector<8x128xf32> to vector<8x128xbf16>
    %29 = tpu.concatenate %27, %28 in 1 : vector<8x128xbf16>, vector<8x128xbf16> -> vector<8x256xbf16>
    %c0_18 = arith.constant 0 : index
    %c0_19 = arith.constant 0 : index
    %30 = vector.load %arg2[%c0_18, %c0_19] : memref<256x128xbf16, #tpu.memory_space<vmem>>, vector<256x128xbf16>
    %cst_20 = arith.constant dense<0.000000e+00> : vector<8x128xf32>
    %31 = tpu.matmul %29, %30, %cst_20 {dimension_numbers = #tpu.dot_dimension_numbers<[1], [0], [0], [1], [0, 0, 1, 1], [], []>} : vector<8x256xbf16>, vector<256x128xbf16>, vector<8x128xf32> -> vector<8x128xf32>
    %c0_21 = arith.constant 0 : index
    %c0_22 = arith.constant 0 : index
    %32 = vector.load %arg3[%c0_21, %c0_22] : memref<1x128xf32, #tpu.memory_space<vmem>>, vector<1x128xf32>
    %33 = vector.broadcast %32 : vector<1x128xf32> to vector<8x128xf32>
    %34 = arith.addf %31, %33 : vector<8x128xf32>
    %35 = math.tanh %34 : vector<8x128xf32>
    %36 = arith.truncf %35 : vector<8x128xf32> to vector<8x128xbf16>
    %37 = arith.truncf %24 : vector<8x128xf32> to vector<8x128xbf16>
    %38 = tpu.concatenate %36, %37 in 1 : vector<8x128xbf16>, vector<8x128xbf16> -> vector<8x256xbf16>
    %c0_23 = arith.constant 0 : index
    %c0_24 = arith.constant 0 : index
    %39 = vector.load %arg4[%c0_23, %c0_24] : memref<256x128xbf16, #tpu.memory_space<vmem>>, vector<256x128xbf16>
    %cst_25 = arith.constant dense<0.000000e+00> : vector<8x128xf32>
    %40 = tpu.matmul %38, %39, %cst_25 {dimension_numbers = #tpu.dot_dimension_numbers<[1], [0], [0], [1], [0, 0, 1, 1], [], []>} : vector<8x256xbf16>, vector<256x128xbf16>, vector<8x128xf32> -> vector<8x128xf32>
    %c0_26 = arith.constant 0 : index
    %c0_27 = arith.constant 0 : index
    %41 = vector.load %arg5[%c0_26, %c0_27] : memref<1x128xf32, #tpu.memory_space<vmem>>, vector<1x128xf32>
    %42 = vector.broadcast %41 : vector<1x128xf32> to vector<8x128xf32>
    %43 = arith.addf %40, %42 : vector<8x128xf32>
    %44 = math.tanh %43 : vector<8x128xf32>
    %c2_i32 = arith.constant 2 : i32
    %45 = arith.index_cast %c2_i32 : i32 to index
    %c0_28 = arith.constant 0 : index
    %c0_29 = arith.constant 0 : index
    %46 = vector.load %arg1[%45, %c0_28, %c0_29] : memref<8x8x128xbf16, #tpu.memory_space<vmem>>, vector<1x8x128xbf16>
    %47 = vector.shape_cast %46 : vector<1x8x128xbf16> to vector<8x128xbf16>
    %48 = arith.truncf %35 : vector<8x128xf32> to vector<8x128xbf16>
    %49 = tpu.concatenate %47, %48 in 1 : vector<8x128xbf16>, vector<8x128xbf16> -> vector<8x256xbf16>
    %c0_30 = arith.constant 0 : index
    %c0_31 = arith.constant 0 : index
    %50 = vector.load %arg2[%c0_30, %c0_31] : memref<256x128xbf16, #tpu.memory_space<vmem>>, vector<256x128xbf16>
    %cst_32 = arith.constant dense<0.000000e+00> : vector<8x128xf32>
    %51 = tpu.matmul %49, %50, %cst_32 {dimension_numbers = #tpu.dot_dimension_numbers<[1], [0], [0], [1], [0, 0, 1, 1], [], []>} : vector<8x256xbf16>, vector<256x128xbf16>, vector<8x128xf32> -> vector<8x128xf32>
    %c0_33 = arith.constant 0 : index
    %c0_34 = arith.constant 0 : index
    %52 = vector.load %arg3[%c0_33, %c0_34] : memref<1x128xf32, #tpu.memory_space<vmem>>, vector<1x128xf32>
    %53 = vector.broadcast %52 : vector<1x128xf32> to vector<8x128xf32>
    %54 = arith.addf %51, %53 : vector<8x128xf32>
    %55 = math.tanh %54 : vector<8x128xf32>
    %56 = arith.truncf %55 : vector<8x128xf32> to vector<8x128xbf16>
    %57 = arith.truncf %44 : vector<8x128xf32> to vector<8x128xbf16>
    %58 = tpu.concatenate %56, %57 in 1 : vector<8x128xbf16>, vector<8x128xbf16> -> vector<8x256xbf16>
    %c0_35 = arith.constant 0 : index
    %c0_36 = arith.constant 0 : index
    %59 = vector.load %arg4[%c0_35, %c0_36] : memref<256x128xbf16, #tpu.memory_space<vmem>>, vector<256x128xbf16>
    %cst_37 = arith.constant dense<0.000000e+00> : vector<8x128xf32>
    %60 = tpu.matmul %58, %59, %cst_37 {dimension_numbers = #tpu.dot_dimension_numbers<[1], [0], [0], [1], [0, 0, 1, 1], [], []>} : vector<8x256xbf16>, vector<256x128xbf16>, vector<8x128xf32> -> vector<8x128xf32>
    %c0_38 = arith.constant 0 : index
    %c0_39 = arith.constant 0 : index
    %61 = vector.load %arg5[%c0_38, %c0_39] : memref<1x128xf32, #tpu.memory_space<vmem>>, vector<1x128xf32>
    %62 = vector.broadcast %61 : vector<1x128xf32> to vector<8x128xf32>
    %63 = arith.addf %60, %62 : vector<8x128xf32>
    %64 = math.tanh %63 : vector<8x128xf32>
    %c3_i32 = arith.constant 3 : i32
    %65 = arith.index_cast %c3_i32 : i32 to index
    %c0_40 = arith.constant 0 : index
    %c0_41 = arith.constant 0 : index
    %66 = vector.load %arg1[%65, %c0_40, %c0_41] : memref<8x8x128xbf16, #tpu.memory_space<vmem>>, vector<1x8x128xbf16>
    %67 = vector.shape_cast %66 : vector<1x8x128xbf16> to vector<8x128xbf16>
    %68 = arith.truncf %55 : vector<8x128xf32> to vector<8x128xbf16>
    %69 = tpu.concatenate %67, %68 in 1 : vector<8x128xbf16>, vector<8x128xbf16> -> vector<8x256xbf16>
    %c0_42 = arith.constant 0 : index
    %c0_43 = arith.constant 0 : index
    %70 = vector.load %arg2[%c0_42, %c0_43] : memref<256x128xbf16, #tpu.memory_space<vmem>>, vector<256x128xbf16>
    %cst_44 = arith.constant dense<0.000000e+00> : vector<8x128xf32>
    %71 = tpu.matmul %69, %70, %cst_44 {dimension_numbers = #tpu.dot_dimension_numbers<[1], [0], [0], [1], [0, 0, 1, 1], [], []>} : vector<8x256xbf16>, vector<256x128xbf16>, vector<8x128xf32> -> vector<8x128xf32>
    %c0_45 = arith.constant 0 : index
    %c0_46 = arith.constant 0 : index
    %72 = vector.load %arg3[%c0_45, %c0_46] : memref<1x128xf32, #tpu.memory_space<vmem>>, vector<1x128xf32>
    %73 = vector.broadcast %72 : vector<1x128xf32> to vector<8x128xf32>
    %74 = arith.addf %71, %73 : vector<8x128xf32>
    %75 = math.tanh %74 : vector<8x128xf32>
    %76 = arith.truncf %75 : vector<8x128xf32> to vector<8x128xbf16>
    %77 = arith.truncf %64 : vector<8x128xf32> to vector<8x128xbf16>
    %78 = tpu.concatenate %76, %77 in 1 : vector<8x128xbf16>, vector<8x128xbf16> -> vector<8x256xbf16>
    %c0_47 = arith.constant 0 : index
    %c0_48 = arith.constant 0 : index
    %79 = vector.load %arg4[%c0_47, %c0_48] : memref<256x128xbf16, #tpu.memory_space<vmem>>, vector<256x128xbf16>
    %cst_49 = arith.constant dense<0.000000e+00> : vector<8x128xf32>
    %80 = tpu.matmul %78, %79, %cst_49 {dimension_numbers = #tpu.dot_dimension_numbers<[1], [0], [0], [1], [0, 0, 1, 1], [], []>} : vector<8x256xbf16>, vector<256x128xbf16>, vector<8x128xf32> -> vector<8x128xf32>
    %c0_50 = arith.constant 0 : index
    %c0_51 = arith.constant 0 : index
    %81 = vector.load %arg5[%c0_50, %c0_51] : memref<1x128xf32, #tpu.memory_space<vmem>>, vector<1x128xf32>
    %82 = vector.broadcast %81 : vector<1x128xf32> to vector<8x128xf32>
    %83 = arith.addf %80, %82 : vector<8x128xf32>
    %84 = math.tanh %83 : vector<8x128xf32>
    %c4_i32 = arith.constant 4 : i32
    %85 = arith.index_cast %c4_i32 : i32 to index
    %c0_52 = arith.constant 0 : index
    %c0_53 = arith.constant 0 : index
    %86 = vector.load %arg1[%85, %c0_52, %c0_53] : memref<8x8x128xbf16, #tpu.memory_space<vmem>>, vector<1x8x128xbf16>
    %87 = vector.shape_cast %86 : vector<1x8x128xbf16> to vector<8x128xbf16>
    %88 = arith.truncf %75 : vector<8x128xf32> to vector<8x128xbf16>
    %89 = tpu.concatenate %87, %88 in 1 : vector<8x128xbf16>, vector<8x128xbf16> -> vector<8x256xbf16>
    %c0_54 = arith.constant 0 : index
    %c0_55 = arith.constant 0 : index
    %90 = vector.load %arg2[%c0_54, %c0_55] : memref<256x128xbf16, #tpu.memory_space<vmem>>, vector<256x128xbf16>
    %cst_56 = arith.constant dense<0.000000e+00> : vector<8x128xf32>
    %91 = tpu.matmul %89, %90, %cst_56 {dimension_numbers = #tpu.dot_dimension_numbers<[1], [0], [0], [1], [0, 0, 1, 1], [], []>} : vector<8x256xbf16>, vector<256x128xbf16>, vector<8x128xf32> -> vector<8x128xf32>
    %c0_57 = arith.constant 0 : index
    %c0_58 = arith.constant 0 : index
    %92 = vector.load %arg3[%c0_57, %c0_58] : memref<1x128xf32, #tpu.memory_space<vmem>>, vector<1x128xf32>
    %93 = vector.broadcast %92 : vector<1x128xf32> to vector<8x128xf32>
    %94 = arith.addf %91, %93 : vector<8x128xf32>
    %95 = math.tanh %94 : vector<8x128xf32>
    %96 = arith.truncf %95 : vector<8x128xf32> to vector<8x128xbf16>
    %97 = arith.truncf %84 : vector<8x128xf32> to vector<8x128xbf16>
    %98 = tpu.concatenate %96, %97 in 1 : vector<8x128xbf16>, vector<8x128xbf16> -> vector<8x256xbf16>
    %c0_59 = arith.constant 0 : index
    %c0_60 = arith.constant 0 : index
    %99 = vector.load %arg4[%c0_59, %c0_60] : memref<256x128xbf16, #tpu.memory_space<vmem>>, vector<256x128xbf16>
    %cst_61 = arith.constant dense<0.000000e+00> : vector<8x128xf32>
    %100 = tpu.matmul %98, %99, %cst_61 {dimension_numbers = #tpu.dot_dimension_numbers<[1], [0], [0], [1], [0, 0, 1, 1], [], []>} : vector<8x256xbf16>, vector<256x128xbf16>, vector<8x128xf32> -> vector<8x128xf32>
    %c0_62 = arith.constant 0 : index
    %c0_63 = arith.constant 0 : index
    %101 = vector.load %arg5[%c0_62, %c0_63] : memref<1x128xf32, #tpu.memory_space<vmem>>, vector<1x128xf32>
    %102 = vector.broadcast %101 : vector<1x128xf32> to vector<8x128xf32>
    %103 = arith.addf %100, %102 : vector<8x128xf32>
    %104 = math.tanh %103 : vector<8x128xf32>
    %c5_i32 = arith.constant 5 : i32
    %105 = arith.index_cast %c5_i32 : i32 to index
    %c0_64 = arith.constant 0 : index
    %c0_65 = arith.constant 0 : index
    %106 = vector.load %arg1[%105, %c0_64, %c0_65] : memref<8x8x128xbf16, #tpu.memory_space<vmem>>, vector<1x8x128xbf16>
    %107 = vector.shape_cast %106 : vector<1x8x128xbf16> to vector<8x128xbf16>
    %108 = arith.truncf %95 : vector<8x128xf32> to vector<8x128xbf16>
    %109 = tpu.concatenate %107, %108 in 1 : vector<8x128xbf16>, vector<8x128xbf16> -> vector<8x256xbf16>
    %c0_66 = arith.constant 0 : index
    %c0_67 = arith.constant 0 : index
    %110 = vector.load %arg2[%c0_66, %c0_67] : memref<256x128xbf16, #tpu.memory_space<vmem>>, vector<256x128xbf16>
    %cst_68 = arith.constant dense<0.000000e+00> : vector<8x128xf32>
    %111 = tpu.matmul %109, %110, %cst_68 {dimension_numbers = #tpu.dot_dimension_numbers<[1], [0], [0], [1], [0, 0, 1, 1], [], []>} : vector<8x256xbf16>, vector<256x128xbf16>, vector<8x128xf32> -> vector<8x128xf32>
    %c0_69 = arith.constant 0 : index
    %c0_70 = arith.constant 0 : index
    %112 = vector.load %arg3[%c0_69, %c0_70] : memref<1x128xf32, #tpu.memory_space<vmem>>, vector<1x128xf32>
    %113 = vector.broadcast %112 : vector<1x128xf32> to vector<8x128xf32>
    %114 = arith.addf %111, %113 : vector<8x128xf32>
    %115 = math.tanh %114 : vector<8x128xf32>
    %116 = arith.truncf %115 : vector<8x128xf32> to vector<8x128xbf16>
    %117 = arith.truncf %104 : vector<8x128xf32> to vector<8x128xbf16>
    %118 = tpu.concatenate %116, %117 in 1 : vector<8x128xbf16>, vector<8x128xbf16> -> vector<8x256xbf16>
    %c0_71 = arith.constant 0 : index
    %c0_72 = arith.constant 0 : index
    %119 = vector.load %arg4[%c0_71, %c0_72] : memref<256x128xbf16, #tpu.memory_space<vmem>>, vector<256x128xbf16>
    %cst_73 = arith.constant dense<0.000000e+00> : vector<8x128xf32>
    %120 = tpu.matmul %118, %119, %cst_73 {dimension_numbers = #tpu.dot_dimension_numbers<[1], [0], [0], [1], [0, 0, 1, 1], [], []>} : vector<8x256xbf16>, vector<256x128xbf16>, vector<8x128xf32> -> vector<8x128xf32>
    %c0_74 = arith.constant 0 : index
    %c0_75 = arith.constant 0 : index
    %121 = vector.load %arg5[%c0_74, %c0_75] : memref<1x128xf32, #tpu.memory_space<vmem>>, vector<1x128xf32>
    %122 = vector.broadcast %121 : vector<1x128xf32> to vector<8x128xf32>
    %123 = arith.addf %120, %122 : vector<8x128xf32>
    %124 = math.tanh %123 : vector<8x128xf32>
    %c6_i32 = arith.constant 6 : i32
    %125 = arith.index_cast %c6_i32 : i32 to index
    %c0_76 = arith.constant 0 : index
    %c0_77 = arith.constant 0 : index
    %126 = vector.load %arg1[%125, %c0_76, %c0_77] : memref<8x8x128xbf16, #tpu.memory_space<vmem>>, vector<1x8x128xbf16>
    %127 = vector.shape_cast %126 : vector<1x8x128xbf16> to vector<8x128xbf16>
    %128 = arith.truncf %115 : vector<8x128xf32> to vector<8x128xbf16>
    %129 = tpu.concatenate %127, %128 in 1 : vector<8x128xbf16>, vector<8x128xbf16> -> vector<8x256xbf16>
    %c0_78 = arith.constant 0 : index
    %c0_79 = arith.constant 0 : index
    %130 = vector.load %arg2[%c0_78, %c0_79] : memref<256x128xbf16, #tpu.memory_space<vmem>>, vector<256x128xbf16>
    %cst_80 = arith.constant dense<0.000000e+00> : vector<8x128xf32>
    %131 = tpu.matmul %129, %130, %cst_80 {dimension_numbers = #tpu.dot_dimension_numbers<[1], [0], [0], [1], [0, 0, 1, 1], [], []>} : vector<8x256xbf16>, vector<256x128xbf16>, vector<8x128xf32> -> vector<8x128xf32>
    %c0_81 = arith.constant 0 : index
    %c0_82 = arith.constant 0 : index
    %132 = vector.load %arg3[%c0_81, %c0_82] : memref<1x128xf32, #tpu.memory_space<vmem>>, vector<1x128xf32>
    %133 = vector.broadcast %132 : vector<1x128xf32> to vector<8x128xf32>
    %134 = arith.addf %131, %133 : vector<8x128xf32>
    %135 = math.tanh %134 : vector<8x128xf32>
    %136 = arith.truncf %135 : vector<8x128xf32> to vector<8x128xbf16>
    %137 = arith.truncf %124 : vector<8x128xf32> to vector<8x128xbf16>
    %138 = tpu.concatenate %136, %137 in 1 : vector<8x128xbf16>, vector<8x128xbf16> -> vector<8x256xbf16>
    %c0_83 = arith.constant 0 : index
    %c0_84 = arith.constant 0 : index
    %139 = vector.load %arg4[%c0_83, %c0_84] : memref<256x128xbf16, #tpu.memory_space<vmem>>, vector<256x128xbf16>
    %cst_85 = arith.constant dense<0.000000e+00> : vector<8x128xf32>
    %140 = tpu.matmul %138, %139, %cst_85 {dimension_numbers = #tpu.dot_dimension_numbers<[1], [0], [0], [1], [0, 0, 1, 1], [], []>} : vector<8x256xbf16>, vector<256x128xbf16>, vector<8x128xf32> -> vector<8x128xf32>
    %c0_86 = arith.constant 0 : index
    %c0_87 = arith.constant 0 : index
    %141 = vector.load %arg5[%c0_86, %c0_87] : memref<1x128xf32, #tpu.memory_space<vmem>>, vector<1x128xf32>
    %142 = vector.broadcast %141 : vector<1x128xf32> to vector<8x128xf32>
    %143 = arith.addf %140, %142 : vector<8x128xf32>
    %144 = math.tanh %143 : vector<8x128xf32>
    %c7_i32 = arith.constant 7 : i32
    %145 = arith.index_cast %c7_i32 : i32 to index
    %c0_88 = arith.constant 0 : index
    %c0_89 = arith.constant 0 : index
    %146 = vector.load %arg1[%145, %c0_88, %c0_89] : memref<8x8x128xbf16, #tpu.memory_space<vmem>>, vector<1x8x128xbf16>
    %147 = vector.shape_cast %146 : vector<1x8x128xbf16> to vector<8x128xbf16>
    %148 = arith.truncf %135 : vector<8x128xf32> to vector<8x128xbf16>
    %149 = tpu.concatenate %147, %148 in 1 : vector<8x128xbf16>, vector<8x128xbf16> -> vector<8x256xbf16>
    %c0_90 = arith.constant 0 : index
    %c0_91 = arith.constant 0 : index
    %150 = vector.load %arg2[%c0_90, %c0_91] : memref<256x128xbf16, #tpu.memory_space<vmem>>, vector<256x128xbf16>
    %cst_92 = arith.constant dense<0.000000e+00> : vector<8x128xf32>
    %151 = tpu.matmul %149, %150, %cst_92 {dimension_numbers = #tpu.dot_dimension_numbers<[1], [0], [0], [1], [0, 0, 1, 1], [], []>} : vector<8x256xbf16>, vector<256x128xbf16>, vector<8x128xf32> -> vector<8x128xf32>
    %c0_93 = arith.constant 0 : index
    %c0_94 = arith.constant 0 : index
    %152 = vector.load %arg3[%c0_93, %c0_94] : memref<1x128xf32, #tpu.memory_space<vmem>>, vector<1x128xf32>
    %153 = vector.broadcast %152 : vector<1x128xf32> to vector<8x128xf32>
    %154 = arith.addf %151, %153 : vector<8x128xf32>
    %155 = math.tanh %154 : vector<8x128xf32>
    %156 = arith.truncf %155 : vector<8x128xf32> to vector<8x128xbf16>
    %157 = arith.truncf %144 : vector<8x128xf32> to vector<8x128xbf16>
    %158 = tpu.concatenate %156, %157 in 1 : vector<8x128xbf16>, vector<8x128xbf16> -> vector<8x256xbf16>
    %c0_95 = arith.constant 0 : index
    %c0_96 = arith.constant 0 : index
    %159 = vector.load %arg4[%c0_95, %c0_96] : memref<256x128xbf16, #tpu.memory_space<vmem>>, vector<256x128xbf16>
    %cst_97 = arith.constant dense<0.000000e+00> : vector<8x128xf32>
    %160 = tpu.matmul %158, %159, %cst_97 {dimension_numbers = #tpu.dot_dimension_numbers<[1], [0], [0], [1], [0, 0, 1, 1], [], []>} : vector<8x256xbf16>, vector<256x128xbf16>, vector<8x128xf32> -> vector<8x128xf32>
    %c0_98 = arith.constant 0 : index
    %c0_99 = arith.constant 0 : index
    %161 = vector.load %arg5[%c0_98, %c0_99] : memref<1x128xf32, #tpu.memory_space<vmem>>, vector<1x128xf32>
    %162 = vector.broadcast %161 : vector<1x128xf32> to vector<8x128xf32>
    %163 = arith.addf %160, %162 : vector<8x128xf32>
    %164 = math.tanh %163 : vector<8x128xf32>
    %c8_i32 = arith.constant 8 : i32
    %c0_100 = arith.constant 0 : index
    %c0_101 = arith.constant 0 : index
    %165 = vector.load %arg9[%c0_100, %c0_101] : memref<8x128xf32, #tpu.memory_space<vmem>>, vector<8x128xf32>
    tpu.vector_store %arg9[%c0_100, %c0_101], %155 {strides = array<i32>} : memref<8x128xf32, #tpu.memory_space<vmem>>, vector<8x128xf32>,
    %c0_102 = arith.constant 0 : index
    %c0_103 = arith.constant 0 : index
    %166 = vector.load %arg10[%c0_102, %c0_103] : memref<8x128xf32, #tpu.memory_space<vmem>>, vector<8x128xf32>
    tpu.vector_store %arg10[%c0_102, %c0_103], %164 {strides = array<i32>} : memref<8x128xf32, #tpu.memory_space<vmem>>, vector<8x128xf32>,
    %c0_i32_104 = arith.constant 0 : i32
    %167 = arith.cmpi eq, %arg0, %c0_i32_104 : i32
    %168 = arith.extui %167 : i1 to i32
    %c0_i32_105 = arith.constant 0 : i32
    %169 = arith.cmpi ne, %168, %c0_i32_105 : i32
    scf.if %169 {
      %170 = arith.truncf %164 : vector<8x128xf32> to vector<8x128xbf16>
      %c0_106 = arith.constant 0 : index
      %c0_107 = arith.constant 0 : index
      %171 = vector.load %arg6[%c0_106, %c0_107] : memref<128x128xbf16, #tpu.memory_space<vmem>>, vector<128x128xbf16>
      %cst_108 = arith.constant dense<0.000000e+00> : vector<8x128xf32>
      %172 = tpu.matmul %170, %171, %cst_108 {dimension_numbers = #tpu.dot_dimension_numbers<[1], [0], [0], [1], [0, 0, 1, 1], [], []>} : vector<8x128xbf16>, vector<128x128xbf16>, vector<8x128xf32> -> vector<8x128xf32>
      %c0_109 = arith.constant 0 : index
      %c0_110 = arith.constant 0 : index
      %173 = vector.load %arg7[%c0_109, %c0_110] : memref<1x128xf32, #tpu.memory_space<vmem>>, vector<1x128xf32>
      %174 = vector.broadcast %173 : vector<1x128xf32> to vector<8x128xf32>
      %175 = arith.addf %172, %174 : vector<8x128xf32>
      %c0_111 = arith.constant 0 : index
      %c0_112 = arith.constant 0 : index
      %176 = vector.load %arg8[%c0_111, %c0_112] : memref<8x128xf32, #tpu.memory_space<vmem>>, vector<8x128xf32>
      tpu.vector_store %arg8[%c0_111, %c0_112], %175 {strides = array<i32>} : memref<8x128xf32, #tpu.memory_space<vmem>>, vector<8x128xf32>,
    } else {
    }
    return
  }
  func.func @transform_0(%arg0: i32) -> (i32, i32, i32) {
    %c0_i32 = arith.constant 0 : i32
    %c0_i32_0 = arith.constant 0 : i32
    %c0_i32_1 = arith.constant 0 : i32
    return %arg0, %c0_i32, %c0_i32_0 : i32, i32, i32
  }
  func.func @transform_1(%arg0: i32) -> (i32, i32) {
    %c0_i32 = arith.constant 0 : i32
    %c0_i32_0 = arith.constant 0 : i32
    %c0_i32_1 = arith.constant 0 : i32
    return %c0_i32, %c0_i32_0 : i32, i32
  }
  func.func @transform_2(%arg0: i32) -> (i32, i32) {
    %c0_i32 = arith.constant 0 : i32
    %c0_i32_0 = arith.constant 0 : i32
    %c0_i32_1 = arith.constant 0 : i32
    return %c0_i32, %c0_i32_0 : i32, i32
  }
  func.func @transform_3(%arg0: i32) -> (i32, i32) {
    %c0_i32 = arith.constant 0 : i32
    %c0_i32_0 = arith.constant 0 : i32
    %c0_i32_1 = arith.constant 0 : i32
    return %c0_i32, %c0_i32_0 : i32, i32
  }
  func.func @transform_4(%arg0: i32) -> (i32, i32) {
    %c0_i32 = arith.constant 0 : i32
    %c0_i32_0 = arith.constant 0 : i32
    %c0_i32_1 = arith.constant 0 : i32
    return %c0_i32, %c0_i32_0 : i32, i32
  }
  func.func @transform_5(%arg0: i32) -> (i32, i32) {
    %c0_i32 = arith.constant 0 : i32
    %c0_i32_0 = arith.constant 0 : i32
    %c0_i32_1 = arith.constant 0 : i32
    return %c0_i32, %c0_i32_0 : i32, i32
  }
  func.func @transform_6(%arg0: i32) -> (i32, i32) {
    %c0_i32 = arith.constant 0 : i32
    %c0_i32_0 = arith.constant 0 : i32
    %c0_i32_1 = arith.constant 0 : i32
    return %c0_i32, %c0_i32_0 : i32, i32
  }
  func.func @transform_7(%arg0: i32) -> (i32, i32) {
    %c0_i32 = arith.constant 0 : i32
    %c0_i32_0 = arith.constant 0 : i32
    %c0_i32_1 = arith.constant 0 : i32
    return %c0_i32, %c0_i32_0 : i32, i32
  }
}

</mosaic_0001>

<llo_original>
// kernel: tpu_custom_call.1
$region0: #{tpu_custom_call.1}
  #allocation0 [shape = 'u32[]', space=smem, size = 0x4, offset = 0x4, fixed_abs, tag = 'smem constant byte address 0x4 - core index']
  #allocation1 [shape = 'u32[144,128]{1,0:T(1,128)}', space=vmem, size = 0x12000, scoped, tag = 'internal scratch']
  #allocation2 [shape = 'f32[8,128]{1,0:T(8,128)}', space=vmem, size = 0x1000, scoped, tag = 'scratch operand']
  #allocation3 [shape = 'f32[8,128]{1,0:T(8,128)}', space=vmem, size = 0x1000, scoped, tag = 'scratch operand']
  %s0 = inlined_call_operand.hbm [shape: bf16[8,8,128], index: 0, kind: input, shape index: {}]
  %s1 = inlined_call_operand.hbm [shape: bf16[256,128], index: 1, kind: input, shape index: {}]
  %s2 = inlined_call_operand.vmem [shape: f32[1,128], index: 2, kind: input, shape index: {}]
  %s3 = inlined_call_operand.hbm [shape: bf16[256,128], index: 3, kind: input, shape index: {}]
  %s4 = inlined_call_operand.vmem [shape: f32[1,128], index: 4, kind: input, shape index: {}]
  %s5 = inlined_call_operand.hbm [shape: bf16[128,128], index: 5, kind: input, shape index: {}]
  %s6 = inlined_call_operand.vmem [shape: f32[1,128], index: 6, kind: input, shape index: {}]
  %s7 = inlined_call_operand.hbm [shape: f32[8,128], index: 7, kind: output, shape index: {}]
  %s8 = sld [smem:[#allocation0]]
  $region62: #{tpu_custom_call.1} parent=0
    _
  %s10 = ssub.s32 1, %s8
  %s11 = scalar_select 0, %s10, %s8
  $region1: #{tpu_custom_call.1} parent=0
    #allocation4 [shape = 'u8[16384]{0}', space=vmem, size = 0x4000, scoped, tag = 'input window, operand 0, single buffered']
    #allocation5 [shape = 's32[1]{0}', space=sflag, size = 0x4, scoped, tag = 'scoped memory for tpu_custom_call.1']
    #allocation6 [shape = 's32[1]{0}', space=sflag, size = 0x4, scoped, tag = 'scoped memory for tpu_custom_call.1']
    #allocation7 [shape = 'u8[65536]{0}', space=vmem, size = 0x10000, scoped, tag = 'input window, operand 1, single buffered']
    #allocation8 [shape = 's32[1]{0}', space=sflag, size = 0x4, scoped, tag = 'scoped memory for tpu_custom_call.1']
    #allocation9 [shape = 'u8[65536]{0}', space=vmem, size = 0x10000, scoped, tag = 'input window, operand 3, single buffered']
    #allocation10 [shape = 'u8[32768]{0}', space=vmem, size = 0x8000, scoped, tag = 'input window, operand 5, single buffered']
    #allocation11 [shape = 's32[1]{0}', space=sflag, size = 0x4, scoped, tag = 'scoped memory for tpu_custom_call.1']
    #allocation12 [shape = 'u8[4096]{0}', space=vmem, size = 0x1000, scoped, tag = 'output window, operand 0, single buffered']
    %12 = vsyncpa [#allocation5], 0
    %13 = vsyncpa [#allocation8], 0
    %14 = vsyncpa [#allocation11], 0
    %15 = vsyncpa [#allocation6], 0
    // Predicated region
    $region2: #{tpu_custom_call.1} parent=1 // pred_check
      _
    $region3: #{tpu_custom_call.1} parent=1 // pred_check_branch
      %17 = sbr.rel (0) target = $region5
    $region4: #{tpu_custom_call.1} parent=1 // pred_region
      %s19 = ssub.s32 512, 512
      %20 = vsyncadd [#allocation5], %s19
      %s21 = sshll.u32 [#allocation4], 4
      %s22 = int_to_ptr.vmem [resolvable:$true] %s21
      %27 = dma.hbm_to_vmem [thread:$0]  %s0, 512, %s22, [#allocation5], 64, 64, 4
    $region5: #{tpu_custom_call.1} parent=1 // pred_fallthru
      _
    // Predicated region
    $region6: #{tpu_custom_call.1} parent=1 // pred_check
      _
    $region7: #{tpu_custom_call.1} parent=1 // pred_check_branch
      %29 = sbr.rel (0) target = $region9
    $region8: #{tpu_custom_call.1} parent=1 // pred_region
      %s31 = ssub.s32 2048, 2048
      %32 = vsyncadd [#allocation8], %s31
      %s33 = sshll.u32 [#allocation7], 4
      %s34 = int_to_ptr.vmem [resolvable:$true] %s33
      %39 = dma.hbm_to_vmem [thread:$0]  %s1, 2048, %s34, [#allocation8], 64, 64, 4
    $region9: #{tpu_custom_call.1} parent=1 // pred_fallthru
      _
    // Predicated region
    $region10: #{tpu_custom_call.1} parent=1 // pred_check
      _
    $region11: #{tpu_custom_call.1} parent=1 // pred_check_branch
      %41 = sbr.rel (0) target = $region13
    $region12: #{tpu_custom_call.1} parent=1 // pred_region
      _
    $region13: #{tpu_custom_call.1} parent=1 // pred_fallthru
      _
    // Predicated region
    $region14: #{tpu_custom_call.1} parent=1 // pred_check
      _
    $region15: #{tpu_custom_call.1} parent=1 // pred_check_branch
      %43 = sbr.rel (0) target = $region17
    $region16: #{tpu_custom_call.1} parent=1 // pred_region
      %s45 = ssub.s32 2048, 2048
      %46 = vsyncadd [#allocation8], %s45
      %s47 = sshll.u32 [#allocation9], 4
      %s48 = int_to_ptr.vmem [resolvable:$true] %s47
      %53 = dma.hbm_to_vmem [thread:$0]  %s3, 2048, %s48, [#allocation8], 64, 64, 4
    $region17: #{tpu_custom_call.1} parent=1 // pred_fallthru
      _
    // Predicated region
    $region18: #{tpu_custom_call.1} parent=1 // pred_check
      _
    $region19: #{tpu_custom_call.1} parent=1 // pred_check_branch
      %55 = sbr.rel (0) target = $region21
    $region20: #{tpu_custom_call.1} parent=1 // pred_region
      _
    $region21: #{tpu_custom_call.1} parent=1 // pred_fallthru
      _
    // Predicated region
    $region22: #{tpu_custom_call.1} parent=1 // pred_check
      _
    $region23: #{tpu_custom_call.1} parent=1 // pred_check_branch
      %57 = sbr.rel (0) target = $region25
    $region24: #{tpu_custom_call.1} parent=1 // pred_region
      %s59 = ssub.s32 1024, 1024
      %60 = vsyncadd [#allocation11], %s59
      %s61 = sshll.u32 [#allocation10], 4
      %s62 = int_to_ptr.vmem [resolvable:$true] %s61
      %67 = dma.hbm_to_vmem [thread:$0]  %s5, 1024, %s62, [#allocation11], 64, 64, 4
    $region25: #{tpu_custom_call.1} parent=1 // pred_fallthru
      _
    // Predicated region
    $region26: #{tpu_custom_call.1} parent=1 // pred_check
      _
    $region27: #{tpu_custom_call.1} parent=1 // pred_check_branch
      %69 = sbr.rel (0) target = $region29
    $region28: #{tpu_custom_call.1} parent=1 // pred_region
      _
    $region29: #{tpu_custom_call.1} parent=1 // pred_fallthru
      _
    // Predicated region
    $region30: #{tpu_custom_call.1} parent=1 // pred_check
      _
    $region31: #{tpu_custom_call.1} parent=1 // pred_check_branch
      %71 = sbr.rel (0) target = $region33
    $region32: #{tpu_custom_call.1} parent=1 // pred_region
      %72 = dma.done [#allocation5], 512
    $region33: #{tpu_custom_call.1} parent=1 // pred_fallthru
      _
    // Predicated region
    $region34: #{tpu_custom_call.1} parent=1 // pred_check
      _
    $region35: #{tpu_custom_call.1} parent=1 // pred_check_branch
      %74 = sbr.rel (0) target = $region37
    $region36: #{tpu_custom_call.1} parent=1 // pred_region
      %75 = dma.done [#allocation8], 2048
    $region37: #{tpu_custom_call.1} parent=1 // pred_fallthru
      _
    // Predicated region
    $region38: #{tpu_custom_call.1} parent=1 // pred_check
      _
    $region39: #{tpu_custom_call.1} parent=1 // pred_check_branch
      %77 = sbr.rel (0) target = $region41
    $region40: #{tpu_custom_call.1} parent=1 // pred_region
      %78 = dma.done [#allocation8], 2048
    $region41: #{tpu_custom_call.1} parent=1 // pred_fallthru
      _
    // Predicated region
    $region42: #{tpu_custom_call.1} parent=1 // pred_check
      _
    $region43: #{tpu_custom_call.1} parent=1 // pred_check_branch
      %80 = sbr.rel (0) target = $region45
    $region44: #{tpu_custom_call.1} parent=1 // pred_region
      %81 = dma.done [#allocation11], 1024
    $region45: #{tpu_custom_call.1} parent=1 // pred_fallthru
      _
    %p83 = scmp.eq.s32.totalorder 0, 0
    // Predicated region
    $region46: #{tpu_custom_call.1} parent=1 // pred_check
      %p84 = pneg %p83
    $region47: #{tpu_custom_call.1} parent=1 // pred_check_branch
      %86 = sbr.rel (%p84) target = $region49
    $region48: #{tpu_custom_call.1} parent=1 // pred_region
      %87 = vst [vmem:[#allocation2] sm:$0xff] 0.0
      %88 = vst [vmem:[#allocation3] sm:$0xff] 0.0
    $region49: #{tpu_custom_call.1} parent=1 // pred_fallthru
      _
    %v89 = vld [vmem:[#allocation2] sm:$0xff]
    %v90 = vld [vmem:[#allocation3] sm:$0xff]
    %v91 = vld [vmem:[#allocation4] sm:$0xf]
    %v92 = vpack.c.bf16 %v89, %v89
    %v93 = vld [vmem:[#allocation7] sm:$0xf]
    %v94 = vld [vmem:[#allocation7 + $0x4] sm:$0xf]
    %v95 = vld [vmem:[#allocation7 + $0x8] sm:$0xf]
    %v96 = vld [vmem:[#allocation7 + $0xc] sm:$0xf]
    %v97 = vld [vmem:[#allocation7 + $0x10] sm:$0xf]
    %v98 = vld [vmem:[#allocation7 + $0x14] sm:$0xf]
    %v99 = vld [vmem:[#allocation7 + $0x18] sm:$0xf]
    %v100 = vld [vmem:[#allocation7 + $0x1c] sm:$0xf]
    %v101 = vld [vmem:[#allocation7 + $0x20] sm:$0xf]
    %v102 = vld [vmem:[#allocation7 + $0x24] sm:$0xf]
    %v103 = vld [vmem:[#allocation7 + $0x28] sm:$0xf]
    %v104 = vld [vmem:[#allocation7 + $0x2c] sm:$0xf]
    %v105 = vld [vmem:[#allocation7 + $0x30] sm:$0xf]
    %v106 = vld [vmem:[#allocation7 + $0x34] sm:$0xf]
    %v107 = vld [vmem:[#allocation7 + $0x38] sm:$0xf]
    %v108 = vld [vmem:[#allocation7 + $0x3c] sm:$0xf]
    %v109 = vld [vmem:[#allocation7 + $0x40] sm:$0xf]
    %v110 = vld [vmem:[#allocation7 + $0x44] sm:$0xf]
    %v111 = vld [vmem:[#allocation7 + $0x48] sm:$0xf]
    %v112 = vld [vmem:[#allocation7 + $0x4c] sm:$0xf]
    %v113 = vld [vmem:[#allocation7 + $0x50] sm:$0xf]
    %v114 = vld [vmem:[#allocation7 + $0x54] sm:$0xf]
    %v115 = vld [vmem:[#allocation7 + $0x58] sm:$0xf]
    %v116 = vld [vmem:[#allocation7 + $0x5c] sm:$0xf]
    %v117 = vld [vmem:[#allocation7 + $0x60] sm:$0xf]
    %v118 = vld [vmem:[#allocation7 + $0x64] sm:$0xf]
    %v119 = vld [vmem:[#allocation7 + $0x68] sm:$0xf]
    %v120 = vld [vmem:[#allocation7 + $0x6c] sm:$0xf]
    %v121 = vld [vmem:[#allocation7 + $0x70] sm:$0xf]
    %v122 = vld [vmem:[#allocation7 + $0x74] sm:$0xf]
    %v123 = vld [vmem:[#allocation7 + $0x78] sm:$0xf]
    %v124 = vld [vmem:[#allocation7 + $0x7c] sm:$0xf]
    %v125 = vld [vmem:[%s2] sm:$0x1]
    %v127 = vlaneseq
    %v128 = vshrl.u32 %v127, 7
    %v129 = vsub.s32 0, %v128
    %v130 = vrot.slane %v125, %v129
    %v164 = vunpack.c.l.b16 %v93
    %v165 = vunpack.c.l.b16 %v94
    %v166 = vunpack.c.l.b16 %v95
    %v167 = vunpack.c.l.b16 %v96
    %v168 = vunpack.c.l.b16 %v97
    %v169 = vunpack.c.l.b16 %v98
    %v170 = vunpack.c.l.b16 %v99
    %v171 = vunpack.c.l.b16 %v100
    %v172 = vunpack.c.l.b16 %v101
    %v173 = vunpack.c.l.b16 %v102
    %v174 = vunpack.c.l.b16 %v103
    %v175 = vunpack.c.l.b16 %v104
    %v176 = vunpack.c.l.b16 %v105
    %v177 = vunpack.c.l.b16 %v106
    %v178 = vunpack.c.l.b16 %v107
    %v179 = vunpack.c.l.b16 %v108
    %v180 = vunpack.c.l.b16 %v109
    %v181 = vunpack.c.l.b16 %v110
    %v182 = vunpack.c.l.b16 %v111
    %v183 = vunpack.c.l.b16 %v112
    %v184 = vunpack.c.l.b16 %v113
    %v185 = vunpack.c.l.b16 %v114
    %v186 = vunpack.c.l.b16 %v115
    %v187 = vunpack.c.l.b16 %v116
    %v188 = vunpack.c.l.b16 %v117
    %v189 = vunpack.c.l.b16 %v118
    %v190 = vunpack.c.l.b16 %v119
    %v191 = vunpack.c.l.b16 %v120
    %v192 = vunpack.c.l.b16 %v121
    %v193 = vunpack.c.l.b16 %v122
    %v194 = vunpack.c.l.b16 %v123
    %v195 = vunpack.c.l.b16 %v124
    %v196 = vpack.c.b16 %v165, %v164
    %v197 = vpack.c.b16 %v167, %v166
    %v198 = vpack.c.b16 %v169, %v168
    %v199 = vpack.c.b16 %v171, %v170
    %v200 = vpack.c.b16 %v173, %v172
    %v201 = vpack.c.b16 %v175, %v174
    %v202 = vpack.c.b16 %v177, %v176
    %v203 = vpack.c.b16 %v179, %v178
    %v204 = vpack.c.b16 %v181, %v180
    %v205 = vpack.c.b16 %v183, %v182
    %v206 = vpack.c.b16 %v185, %v184
    %v207 = vpack.c.b16 %v187, %v186
    %v208 = vpack.c.b16 %v189, %v188
    %v209 = vpack.c.b16 %v191, %v190
    %v210 = vpack.c.b16 %v193, %v192
    %v211 = vpack.c.b16 %v195, %v194
    %228 = vmatprep.subr.bf16.mxu0 0
    %229 = vmatpush1.bf16.msra.mxu0 %v196
    %230 = vmatprep.subr.bf16.mxu0 0
    %231 = vmatpush1.bf16.msra.mxu0 %v197
    %232 = vmatprep.subr.bf16.mxu0 0
    %233 = vmatpush1.bf16.msra.mxu0 %v198
    %234 = vmatprep.subr.bf16.mxu0 0
    %235 = vmatpush1.bf16.msra.mxu0 %v199
    %236 = vmatprep.subr.bf16.mxu0 0
    %237 = vmatpush1.bf16.msra.mxu0 %v200
    %238 = vmatprep.subr.bf16.mxu0 0
    %239 = vmatpush1.bf16.msra.mxu0 %v201
    %240 = vmatprep.subr.bf16.mxu0 0
    %241 = vmatpush1.bf16.msra.mxu0 %v202
    %242 = vmatprep.subr.bf16.mxu0 0
    %243 = vmatpush1.bf16.msra.mxu0 %v203
    %244 = vmatprep.subr.bf16.mxu0 0
    %245 = vmatpush1.bf16.msra.mxu0 %v204
    %246 = vmatprep.subr.bf16.mxu0 0
    %247 = vmatpush1.bf16.msra.mxu0 %v205
    %248 = vmatprep.subr.bf16.mxu0 0
    %249 = vmatpush1.bf16.msra.mxu0 %v206
    %250 = vmatprep.subr.bf16.mxu0 0
    %251 = vmatpush1.bf16.msra.mxu0 %v207
    %252 = vmatprep.subr.bf16.mxu0 0
    %253 = vmatpush1.bf16.msra.mxu0 %v208
    %254 = vmatprep.subr.bf16.mxu0 0
    %255 = vmatpush1.bf16.msra.mxu0 %v209
    %256 = vmatprep.subr.bf16.mxu0 0
    %257 = vmatpush1.bf16.msra.mxu0 %v210
    %258 = vmatprep.subr.bf16.mxu0 0
    %259 = vmatpush1.bf16.msra.mxu0 %v211
    %260 = vmatprep.mubr.bf16.mxu0 %v92
    %261 = vmatmul.mubr.bf16.gmra.mrb[0].mxu0 %v91
    %v262 = vpop.f32.mrb[0].mxu0
    %v263 = vadd.f32 %v130, %v262
    %v264 = vpop.f32.mrb[0].mxu0
    %v265 = vpop.f32.mrb[0].mxu0
    %v266 = vpop.f32.mrb[0].mxu0
    %267 = vdwg.mxu0
    %v268 = vtanh.pop %v263
    %v269 = vpack.c.bf16 %v268, %v268
    %v270 = vpack.c.bf16 %v90, %v90
    %v271 = vld [vmem:[#allocation9] sm:$0xf]
    %v272 = vld [vmem:[#allocation9 + $0x4] sm:$0xf]
    %v273 = vld [vmem:[#allocation9 + $0x8] sm:$0xf]
    %v274 = vld [vmem:[#allocation9 + $0xc] sm:$0xf]
    %v275 = vld [vmem:[#allocation9 + $0x10] sm:$0xf]
    %v276 = vld [vmem:[#allocation9 + $0x14] sm:$0xf]
    %v277 = vld [vmem:[#allocation9 + $0x18] sm:$0xf]
    %v278 = vld [vmem:[#allocation9 + $0x1c] sm:$0xf]
    %v279 = vld [vmem:[#allocation9 + $0x20] sm:$0xf]
    %v280 = vld [vmem:[#allocation9 + $0x24] sm:$0xf]
    %v281 = vld [vmem:[#allocation9 + $0x28] sm:$0xf]
    %v282 = vld [vmem:[#allocation9 + $0x2c] sm:$0xf]
    %v283 = vld [vmem:[#allocation9 + $0x30] sm:$0xf]
    %v284 = vld [vmem:[#allocation9 + $0x34] sm:$0xf]
    %v285 = vld [vmem:[#allocation9 + $0x38] sm:$0xf]
    %v286 = vld [vmem:[#allocation9 + $0x3c] sm:$0xf]
    %v287 = vld [vmem:[#allocation9 + $0x40] sm:$0xf]
    %v288 = vld [vmem:[#allocation9 + $0x44] sm:$0xf]
    %v289 = vld [vmem:[#allocation9 + $0x48] sm:$0xf]
    %v290 = vld [vmem:[#allocation9 + $0x4c] sm:$0xf]
    %v291 = vld [vmem:[#allocation9 + $0x50] sm:$0xf]
    %v292 = vld [vmem:[#allocation9 + $0x54] sm:$0xf]
    %v293 = vld [vmem:[#allocation9 + $0x58] sm:$0xf]
    %v294 = vld [vmem:[#allocation9 + $0x5c] sm:$0xf]
    %v295 = vld [vmem:[#allocation9 + $0x60] sm:$0xf]
    %v296 = vld [vmem:[#allocation9 + $0x64] sm:$0xf]
    %v297 = vld [vmem:[#allocation9 + $0x68] sm:$0xf]
    %v298 = vld [vmem:[#allocation9 + $0x6c] sm:$0xf]
    %v299 = vld [vmem:[#allocation9 + $0x70] sm:$0xf]
    %v300 = vld [vmem:[#allocation9 + $0x74] sm:$0xf]
    %v301 = vld [vmem:[#allocation9 + $0x78] sm:$0xf]
    %v302 = vld [vmem:[#allocation9 + $0x7c] sm:$0xf]
    %v303 = vld [vmem:[%s4] sm:$0x1]
    %v305 = vlaneseq
    %v306 = vshrl.u32 %v305, 7
    %v307 = vsub.s32 0, %v306
    %v308 = vrot.slane %v303, %v307
    %v342 = vunpack.c.l.b16 %v271
    %v343 = vunpack.c.l.b16 %v272
    %v344 = vunpack.c.l.b16 %v273
    %v345 = vunpack.c.l.b16 %v274
    %v346 = vunpack.c.l.b16 %v275
    %v347 = vunpack.c.l.b16 %v276
    %v348 = vunpack.c.l.b16 %v277
    %v349 = vunpack.c.l.b16 %v278
    %v350 = vunpack.c.l.b16 %v279
    %v351 = vunpack.c.l.b16 %v280
    %v352 = vunpack.c.l.b16 %v281
    %v353 = vunpack.c.l.b16 %v282
    %v354 = vunpack.c.l.b16 %v283
    %v355 = vunpack.c.l.b16 %v284
    %v356 = vunpack.c.l.b16 %v285
    %v357 = vunpack.c.l.b16 %v286
    %v358 = vunpack.c.l.b16 %v287
    %v359 = vunpack.c.l.b16 %v288
    %v360 = vunpack.c.l.b16 %v289
    %v361 = vunpack.c.l.b16 %v290
    %v362 = vunpack.c.l.b16 %v291
    %v363 = vunpack.c.l.b16 %v292
    %v364 = vunpack.c.l.b16 %v293
    %v365 = vunpack.c.l.b16 %v294
    %v366 = vunpack.c.l.b16 %v295
    %v367 = vunpack.c.l.b16 %v296
    %v368 = vunpack.c.l.b16 %v297
    %v369 = vunpack.c.l.b16 %v298
    %v370 = vunpack.c.l.b16 %v299
    %v371 = vunpack.c.l.b16 %v300
    %v372 = vunpack.c.l.b16 %v301
    %v373 = vunpack.c.l.b16 %v302
    %v374 = vpack.c.b16 %v343, %v342
    %v375 = vpack.c.b16 %v345, %v344
    %v376 = vpack.c.b16 %v347, %v346
    %v377 = vpack.c.b16 %v349, %v348
    %v378 = vpack.c.b16 %v351, %v350
    %v379 = vpack.c.b16 %v353, %v352
    %v380 = vpack.c.b16 %v355, %v354
    %v381 = vpack.c.b16 %v357, %v356
    %v382 = vpack.c.b16 %v359, %v358
    %v383 = vpack.c.b16 %v361, %v360
    %v384 = vpack.c.b16 %v363, %v362
    %v385 = vpack.c.b16 %v365, %v364
    %v386 = vpack.c.b16 %v367, %v366
    %v387 = vpack.c.b16 %v369, %v368
    %v388 = vpack.c.b16 %v371, %v370
    %v389 = vpack.c.b16 %v373, %v372
    %406 = vmatprep.subr.bf16.mxu0 0
    %407 = vmatpush1.bf16.msra.mxu0 %v374
    %408 = vmatprep.subr.bf16.mxu0 0
    %409 = vmatpush1.bf16.msra.mxu0 %v375
    %410 = vmatprep.subr.bf16.mxu0 0
    %411 = vmatpush1.bf16.msra.mxu0 %v376
    %412 = vmatprep.subr.bf16.mxu0 0
    %413 = vmatpush1.bf16.msra.mxu0 %v377
    %414 = vmatprep.subr.bf16.mxu0 0
    %415 = vmatpush1.bf16.msra.mxu0 %v378
    %416 = vmatprep.subr.bf16.mxu0 0
    %417 = vmatpush1.bf16.msra.mxu0 %v379
    %418 = vmatprep.subr.bf16.mxu0 0
    %419 = vmatpush1.bf16.msra.mxu0 %v380
    %420 = vmatprep.subr.bf16.mxu0 0
    %421 = vmatpush1.bf16.msra.mxu0 %v381
    %422 = vmatprep.subr.bf16.mxu0 0
    %423 = vmatpush1.bf16.msra.mxu0 %v382
    %424 = vmatprep.subr.bf16.mxu0 0
    %425 = vmatpush1.bf16.msra.mxu0 %v383
    %426 = vmatprep.subr.bf16.mxu0 0
    %427 = vmatpush1.bf16.msra.mxu0 %v384
    %428 = vmatprep.subr.bf16.mxu0 0
    %429 = vmatpush1.bf16.msra.mxu0 %v385
    %430 = vmatprep.subr.bf16.mxu0 0
    %431 = vmatpush1.bf16.msra.mxu0 %v386
    %432 = vmatprep.subr.bf16.mxu0 0
    %433 = vmatpush1.bf16.msra.mxu0 %v387
    %434 = vmatprep.subr.bf16.mxu0 0
    %435 = vmatpush1.bf16.msra.mxu0 %v388
    %436 = vmatprep.subr.bf16.mxu0 0
    %437 = vmatpush1.bf16.msra.mxu0 %v389
    %438 = vmatprep.mubr.bf16.mxu0 %v270
    %439 = vmatmul.mubr.bf16.gmra.mrb[0].mxu0 %v269
    %v440 = vpop.f32.mrb[0].mxu0
    %v441 = vadd.f32 %v308, %v440
    %v442 = vpop.f32.mrb[0].mxu0
    %v443 = vpop.f32.mrb[0].mxu0
    %v444 = vpop.f32.mrb[0].mxu0
    %445 = vdwg.mxu0
    %v446 = vtanh.pop %v441
    %s447 = scalar_lea.vmem [#allocation4], 4
    %v448 = vld [vmem:[%s447] sm:$0xf]
    %449 = vmatprep.subr.bf16.mxu0 0
    %450 = vmatpush1.bf16.msra.mxu0 %v196
    %451 = vmatprep.subr.bf16.mxu0 0
    %452 = vmatpush1.bf16.msra.mxu0 %v197
    %453 = vmatprep.subr.bf16.mxu0 0
    %454 = vmatpush1.bf16.msra.mxu0 %v198
    %455 = vmatprep.subr.bf16.mxu0 0
    %456 = vmatpush1.bf16.msra.mxu0 %v199
    %457 = vmatprep.subr.bf16.mxu0 0
    %458 = vmatpush1.bf16.msra.mxu0 %v200
    %459 = vmatprep.subr.bf16.mxu0 0
    %460 = vmatpush1.bf16.msra.mxu0 %v201
    %461 = vmatprep.subr.bf16.mxu0 0
    %462 = vmatpush1.bf16.msra.mxu0 %v202
    %463 = vmatprep.subr.bf16.mxu0 0
    %464 = vmatpush1.bf16.msra.mxu0 %v203
    %465 = vmatprep.subr.bf16.mxu0 0
    %466 = vmatpush1.bf16.msra.mxu0 %v204
    %467 = vmatprep.subr.bf16.mxu0 0
    %468 = vmatpush1.bf16.msra.mxu0 %v205
    %469 = vmatprep.subr.bf16.mxu0 0
    %470 = vmatpush1.bf16.msra.mxu0 %v206
    %471 = vmatprep.subr.bf16.mxu0 0
    %472 = vmatpush1.bf16.msra.mxu0 %v207
    %473 = vmatprep.subr.bf16.mxu0 0
    %474 = vmatpush1.bf16.msra.mxu0 %v208
    %475 = vmatprep.subr.bf16.mxu0 0
    %476 = vmatpush1.bf16.msra.mxu0 %v209
    %477 = vmatprep.subr.bf16.mxu0 0
    %478 = vmatpush1.bf16.msra.mxu0 %v210
    %479 = vmatprep.subr.bf16.mxu0 0
    %480 = vmatpush1.bf16.msra.mxu0 %v211
    %481 = vmatprep.mubr.bf16.mxu0 %v269
    %482 = vmatmul.mubr.bf16.gmra.mrb[0].mxu0 %v448
    %v483 = vpop.f32.mrb[0].mxu0
    %v484 = vadd.f32 %v130, %v483
    %v485 = vpop.f32.mrb[0].mxu0
    %v486 = vpop.f32.mrb[0].mxu0
    %v487 = vpop.f32.mrb[0].mxu0
    %488 = vdwg.mxu0
    %v489 = vtanh.pop %v484
    %v490 = vpack.c.bf16 %v489, %v489
    %v491 = vpack.c.bf16 %v446, %v446
    %492 = vmatprep.subr.bf16.mxu0 0
    %493 = vmatpush1.bf16.msra.mxu0 %v374
    %494 = vmatprep.subr.bf16.mxu0 0
    %495 = vmatpush1.bf16.msra.mxu0 %v375
    %496 = vmatprep.subr.bf16.mxu0 0
    %497 = vmatpush1.bf16.msra.mxu0 %v376
    %498 = vmatprep.subr.bf16.mxu0 0
    %499 = vmatpush1.bf16.msra.mxu0 %v377
    %500 = vmatprep.subr.bf16.mxu0 0
    %501 = vmatpush1.bf16.msra.mxu0 %v378
    %502 = vmatprep.subr.bf16.mxu0 0
    %503 = vmatpush1.bf16.msra.mxu0 %v379
    %504 = vmatprep.subr.bf16.mxu0 0
    %505 = vmatpush1.bf16.msra.mxu0 %v380
    %506 = vmatprep.subr.bf16.mxu0 0
    %507 = vmatpush1.bf16.msra.mxu0 %v381
    %508 = vmatprep.subr.bf16.mxu0 0
    %509 = vmatpush1.bf16.msra.mxu0 %v382
    %510 = vmatprep.subr.bf16.mxu0 0
    %511 = vmatpush1.bf16.msra.mxu0 %v383
    %512 = vmatprep.subr.bf16.mxu0 0
    %513 = vmatpush1.bf16.msra.mxu0 %v384
    %514 = vmatprep.subr.bf16.mxu0 0
    %515 = vmatpush1.bf16.msra.mxu0 %v385
    %516 = vmatprep.subr.bf16.mxu0 0
    %517 = vmatpush1.bf16.msra.mxu0 %v386
    %518 = vmatprep.subr.bf16.mxu0 0
    %519 = vmatpush1.bf16.msra.mxu0 %v387
    %520 = vmatprep.subr.bf16.mxu0 0
    %521 = vmatpush1.bf16.msra.mxu0 %v388
    %522 = vmatprep.subr.bf16.mxu0 0
    %523 = vmatpush1.bf16.msra.mxu0 %v389
    %524 = vmatprep.mubr.bf16.mxu0 %v491
    %525 = vmatmul.mubr.bf16.gmra.mrb[0].mxu0 %v490
    %v526 = vpop.f32.mrb[0].mxu0
    %v527 = vadd.f32 %v308, %v526
    %v528 = vpop.f32.mrb[0].mxu0
    %v529 = vpop.f32.mrb[0].mxu0
    %v530 = vpop.f32.mrb[0].mxu0
    %531 = vdwg.mxu0
    %v532 = vtanh.pop %v527
    %s533 = scalar_lea.vmem [#allocation4], 8
    %v534 = vld [vmem:[%s533] sm:$0xf]
    %535 = vmatprep.subr.bf16.mxu0 0
    %536 = vmatpush1.bf16.msra.mxu0 %v196
    %537 = vmatprep.subr.bf16.mxu0 0
    %538 = vmatpush1.bf16.msra.mxu0 %v197
    %539 = vmatprep.subr.bf16.mxu0 0
    %540 = vmatpush1.bf16.msra.mxu0 %v198
    %541 = vmatprep.subr.bf16.mxu0 0
    %542 = vmatpush1.bf16.msra.mxu0 %v199
    %543 = vmatprep.subr.bf16.mxu0 0
    %544 = vmatpush1.bf16.msra.mxu0 %v200
    %545 = vmatprep.subr.bf16.mxu0 0
    %546 = vmatpush1.bf16.msra.mxu0 %v201
    %547 = vmatprep.subr.bf16.mxu0 0
    %548 = vmatpush1.bf16.msra.mxu0 %v202
    %549 = vmatprep.subr.bf16.mxu0 0
    %550 = vmatpush1.bf16.msra.mxu0 %v203
    %551 = vmatprep.subr.bf16.mxu0 0
    %552 = vmatpush1.bf16.msra.mxu0 %v204
    %553 = vmatprep.subr.bf16.mxu0 0
    %554 = vmatpush1.bf16.msra.mxu0 %v205
    %555 = vmatprep.subr.bf16.mxu0 0
    %556 = vmatpush1.bf16.msra.mxu0 %v206
    %557 = vmatprep.subr.bf16.mxu0 0
    %558 = vmatpush1.bf16.msra.mxu0 %v207
    %559 = vmatprep.subr.bf16.mxu0 0
    %560 = vmatpush1.bf16.msra.mxu0 %v208
    %561 = vmatprep.subr.bf16.mxu0 0
    %562 = vmatpush1.bf16.msra.mxu0 %v209
    %563 = vmatprep.subr.bf16.mxu0 0
    %564 = vmatpush1.bf16.msra.mxu0 %v210
    %565 = vmatprep.subr.bf16.mxu0 0
    %566 = vmatpush1.bf16.msra.mxu0 %v211
    %567 = vmatprep.mubr.bf16.mxu0 %v490
    %568 = vmatmul.mubr.bf16.gmra.mrb[0].mxu0 %v534
    %v569 = vpop.f32.mrb[0].mxu0
    %v570 = vadd.f32 %v130, %v569
    %v571 = vpop.f32.mrb[0].mxu0
    %v572 = vpop.f32.mrb[0].mxu0
    %v573 = vpop.f32.mrb[0].mxu0
    %574 = vdwg.mxu0
    %v575 = vtanh.pop %v570
    %v576 = vpack.c.bf16 %v575, %v575
    %v577 = vpack.c.bf16 %v532, %v532
    %578 = vmatprep.subr.bf16.mxu0 0
    %579 = vmatpush1.bf16.msra.mxu0 %v374
    %580 = vmatprep.subr.bf16.mxu0 0
    %581 = vmatpush1.bf16.msra.mxu0 %v375
    %582 = vmatprep.subr.bf16.mxu0 0
    %583 = vmatpush1.bf16.msra.mxu0 %v376
    %584 = vmatprep.subr.bf16.mxu0 0
    %585 = vmatpush1.bf16.msra.mxu0 %v377
    %586 = vmatprep.subr.bf16.mxu0 0
    %587 = vmatpush1.bf16.msra.mxu0 %v378
    %588 = vmatprep.subr.bf16.mxu0 0
    %589 = vmatpush1.bf16.msra.mxu0 %v379
    %590 = vmatprep.subr.bf16.mxu0 0
    %591 = vmatpush1.bf16.msra.mxu0 %v380
    %592 = vmatprep.subr.bf16.mxu0 0
    %593 = vmatpush1.bf16.msra.mxu0 %v381
    %594 = vmatprep.subr.bf16.mxu0 0
    %595 = vmatpush1.bf16.msra.mxu0 %v382
    %596 = vmatprep.subr.bf16.mxu0 0
    %597 = vmatpush1.bf16.msra.mxu0 %v383
    %598 = vmatprep.subr.bf16.mxu0 0
    %599 = vmatpush1.bf16.msra.mxu0 %v384
    %600 = vmatprep.subr.bf16.mxu0 0
    %601 = vmatpush1.bf16.msra.mxu0 %v385
    %602 = vmatprep.subr.bf16.mxu0 0
    %603 = vmatpush1.bf16.msra.mxu0 %v386
    %604 = vmatprep.subr.bf16.mxu0 0
    %605 = vmatpush1.bf16.msra.mxu0 %v387
    %606 = vmatprep.subr.bf16.mxu0 0
    %607 = vmatpush1.bf16.msra.mxu0 %v388
    %608 = vmatprep.subr.bf16.mxu0 0
    %609 = vmatpush1.bf16.msra.mxu0 %v389
    %610 = vmatprep.mubr.bf16.mxu0 %v577
    %611 = vmatmul.mubr.bf16.gmra.mrb[0].mxu0 %v576
    %v612 = vpop.f32.mrb[0].mxu0
    %v613 = vadd.f32 %v308, %v612
    %v614 = vpop.f32.mrb[0].mxu0
    %v615 = vpop.f32.mrb[0].mxu0
    %v616 = vpop.f32.mrb[0].mxu0
    %617 = vdwg.mxu0
    %v618 = vtanh.pop %v613
    %s619 = scalar_lea.vmem [#allocation4], 12
    %v620 = vld [vmem:[%s619] sm:$0xf]
    %621 = vmatprep.subr.bf16.mxu0 0
    %622 = vmatpush1.bf16.msra.mxu0 %v196
    %623 = vmatprep.subr.bf16.mxu0 0
    %624 = vmatpush1.bf16.msra.mxu0 %v197
    %625 = vmatprep.subr.bf16.mxu0 0
    %626 = vmatpush1.bf16.msra.mxu0 %v198
    %627 = vmatprep.subr.bf16.mxu0 0
    %628 = vmatpush1.bf16.msra.mxu0 %v199
    %629 = vmatprep.subr.bf16.mxu0 0
    %630 = vmatpush1.bf16.msra.mxu0 %v200
    %631 = vmatprep.subr.bf16.mxu0 0
    %632 = vmatpush1.bf16.msra.mxu0 %v201
    %633 = vmatprep.subr.bf16.mxu0 0
    %634 = vmatpush1.bf16.msra.mxu0 %v202
    %635 = vmatprep.subr.bf16.mxu0 0
    %636 = vmatpush1.bf16.msra.mxu0 %v203
    %637 = vmatprep.subr.bf16.mxu0 0
    %638 = vmatpush1.bf16.msra.mxu0 %v204
    %639 = vmatprep.subr.bf16.mxu0 0
    %640 = vmatpush1.bf16.msra.mxu0 %v205
    %641 = vmatprep.subr.bf16.mxu0 0
    %642 = vmatpush1.bf16.msra.mxu0 %v206
    %643 = vmatprep.subr.bf16.mxu0 0
    %644 = vmatpush1.bf16.msra.mxu0 %v207
    %645 = vmatprep.subr.bf16.mxu0 0
    %646 = vmatpush1.bf16.msra.mxu0 %v208
    %647 = vmatprep.subr.bf16.mxu0 0
    %648 = vmatpush1.bf16.msra.mxu0 %v209
    %649 = vmatprep.subr.bf16.mxu0 0
    %650 = vmatpush1.bf16.msra.mxu0 %v210
    %651 = vmatprep.subr.bf16.mxu0 0
    %652 = vmatpush1.bf16.msra.mxu0 %v211
    %653 = vmatprep.mubr.bf16.mxu0 %v576
    %654 = vmatmul.mubr.bf16.gmra.mrb[0].mxu0 %v620
    %v655 = vpop.f32.mrb[0].mxu0
    %v656 = vadd.f32 %v130, %v655
    %v657 = vpop.f32.mrb[0].mxu0
    %v658 = vpop.f32.mrb[0].mxu0
    %v659 = vpop.f32.mrb[0].mxu0
    %660 = vdwg.mxu0
    %v661 = vtanh.pop %v656
    %v662 = vpack.c.bf16 %v661, %v661
    %v663 = vpack.c.bf16 %v618, %v618
    %664 = vmatprep.subr.bf16.mxu0 0
    %665 = vmatpush1.bf16.msra.mxu0 %v374
    %666 = vmatprep.subr.bf16.mxu0 0
    %667 = vmatpush1.bf16.msra.mxu0 %v375
    %668 = vmatprep.subr.bf16.mxu0 0
    %669 = vmatpush1.bf16.msra.mxu0 %v376
    %670 = vmatprep.subr.bf16.mxu0 0
    %671 = vmatpush1.bf16.msra.mxu0 %v377
    %672 = vmatprep.subr.bf16.mxu0 0
    %673 = vmatpush1.bf16.msra.mxu0 %v378
    %674 = vmatprep.subr.bf16.mxu0 0
    %675 = vmatpush1.bf16.msra.mxu0 %v379
    %676 = vmatprep.subr.bf16.mxu0 0
    %677 = vmatpush1.bf16.msra.mxu0 %v380
    %678 = vmatprep.subr.bf16.mxu0 0
    %679 = vmatpush1.bf16.msra.mxu0 %v381
    %680 = vmatprep.subr.bf16.mxu0 0
    %681 = vmatpush1.bf16.msra.mxu0 %v382
    %682 = vmatprep.subr.bf16.mxu0 0
    %683 = vmatpush1.bf16.msra.mxu0 %v383
    %684 = vmatprep.subr.bf16.mxu0 0
    %685 = vmatpush1.bf16.msra.mxu0 %v384
    %686 = vmatprep.subr.bf16.mxu0 0
    %687 = vmatpush1.bf16.msra.mxu0 %v385
    %688 = vmatprep.subr.bf16.mxu0 0
    %689 = vmatpush1.bf16.msra.mxu0 %v386
    %690 = vmatprep.subr.bf16.mxu0 0
    %691 = vmatpush1.bf16.msra.mxu0 %v387
    %692 = vmatprep.subr.bf16.mxu0 0
    %693 = vmatpush1.bf16.msra.mxu0 %v388
    %694 = vmatprep.subr.bf16.mxu0 0
    %695 = vmatpush1.bf16.msra.mxu0 %v389
    %696 = vmatprep.mubr.bf16.mxu0 %v663
    %697 = vmatmul.mubr.bf16.gmra.mrb[0].mxu0 %v662
    %v698 = vpop.f32.mrb[0].mxu0
    %v699 = vadd.f32 %v308, %v698
    %v700 = vpop.f32.mrb[0].mxu0
    %v701 = vpop.f32.mrb[0].mxu0
    %v702 = vpop.f32.mrb[0].mxu0
    %703 = vdwg.mxu0
    %v704 = vtanh.pop %v699
    %s705 = scalar_lea.vmem [#allocation4], 16
    %v706 = vld [vmem:[%s705] sm:$0xf]
    %707 = vmatprep.subr.bf16.mxu0 0
    %708 = vmatpush1.bf16.msra.mxu0 %v196
    %709 = vmatprep.subr.bf16.mxu0 0
    %710 = vmatpush1.bf16.msra.mxu0 %v197
    %711 = vmatprep.subr.bf16.mxu0 0
    %712 = vmatpush1.bf16.msra.mxu0 %v198
    %713 = vmatprep.subr.bf16.mxu0 0
    %714 = vmatpush1.bf16.msra.mxu0 %v199
    %715 = vmatprep.subr.bf16.mxu0 0
    %716 = vmatpush1.bf16.msra.mxu0 %v200
    %717 = vmatprep.subr.bf16.mxu0 0
    %718 = vmatpush1.bf16.msra.mxu0 %v201
    %719 = vmatprep.subr.bf16.mxu0 0
    %720 = vmatpush1.bf16.msra.mxu0 %v202
    %721 = vmatprep.subr.bf16.mxu0 0
    %722 = vmatpush1.bf16.msra.mxu0 %v203
    %723 = vmatprep.subr.bf16.mxu0 0
    %724 = vmatpush1.bf16.msra.mxu0 %v204
    %725 = vmatprep.subr.bf16.mxu0 0
    %726 = vmatpush1.bf16.msra.mxu0 %v205
    %727 = vmatprep.subr.bf16.mxu0 0
    %728 = vmatpush1.bf16.msra.mxu0 %v206
    %729 = vmatprep.subr.bf16.mxu0 0
    %730 = vmatpush1.bf16.msra.mxu0 %v207
    %731 = vmatprep.subr.bf16.mxu0 0
    %732 = vmatpush1.bf16.msra.mxu0 %v208
    %733 = vmatprep.subr.bf16.mxu0 0
    %734 = vmatpush1.bf16.msra.mxu0 %v209
    %735 = vmatprep.subr.bf16.mxu0 0
    %736 = vmatpush1.bf16.msra.mxu0 %v210
    %737 = vmatprep.subr.bf16.mxu0 0
    %738 = vmatpush1.bf16.msra.mxu0 %v211
    %739 = vmatprep.mubr.bf16.mxu0 %v662
    %740 = vmatmul.mubr.bf16.gmra.mrb[0].mxu0 %v706
    %v741 = vpop.f32.mrb[0].mxu0
    %v742 = vadd.f32 %v130, %v741
    %v743 = vpop.f32.mrb[0].mxu0
    %v744 = vpop.f32.mrb[0].mxu0
    %v745 = vpop.f32.mrb[0].mxu0
    %746 = vdwg.mxu0
    %v747 = vtanh.pop %v742
    %v748 = vpack.c.bf16 %v747, %v747
    %v749 = vpack.c.bf16 %v704, %v704
    %750 = vmatprep.subr.bf16.mxu0 0
    %751 = vmatpush1.bf16.msra.mxu0 %v374
    %752 = vmatprep.subr.bf16.mxu0 0
    %753 = vmatpush1.bf16.msra.mxu0 %v375
    %754 = vmatprep.subr.bf16.mxu0 0
    %755 = vmatpush1.bf16.msra.mxu0 %v376
    %756 = vmatprep.subr.bf16.mxu0 0
    %757 = vmatpush1.bf16.msra.mxu0 %v377
    %758 = vmatprep.subr.bf16.mxu0 0
    %759 = vmatpush1.bf16.msra.mxu0 %v378
    %760 = vmatprep.subr.bf16.mxu0 0
    %761 = vmatpush1.bf16.msra.mxu0 %v379
    %762 = vmatprep.subr.bf16.mxu0 0
    %763 = vmatpush1.bf16.msra.mxu0 %v380
    %764 = vmatprep.subr.bf16.mxu0 0
    %765 = vmatpush1.bf16.msra.mxu0 %v381
    %766 = vmatprep.subr.bf16.mxu0 0
    %767 = vmatpush1.bf16.msra.mxu0 %v382
    %768 = vmatprep.subr.bf16.mxu0 0
    %769 = vmatpush1.bf16.msra.mxu0 %v383
    %770 = vmatprep.subr.bf16.mxu0 0
    %771 = vmatpush1.bf16.msra.mxu0 %v384
    %772 = vmatprep.subr.bf16.mxu0 0
    %773 = vmatpush1.bf16.msra.mxu0 %v385
    %774 = vmatprep.subr.bf16.mxu0 0
    %775 = vmatpush1.bf16.msra.mxu0 %v386
    %776 = vmatprep.subr.bf16.mxu0 0
    %777 = vmatpush1.bf16.msra.mxu0 %v387
    %778 = vmatprep.subr.bf16.mxu0 0
    %779 = vmatpush1.bf16.msra.mxu0 %v388
    %780 = vmatprep.subr.bf16.mxu0 0
    %781 = vmatpush1.bf16.msra.mxu0 %v389
    %782 = vmatprep.mubr.bf16.mxu0 %v749
    %783 = vmatmul.mubr.bf16.gmra.mrb[0].mxu0 %v748
    %v784 = vpop.f32.mrb[0].mxu0
    %v785 = vadd.f32 %v308, %v784
    %v786 = vpop.f32.mrb[0].mxu0
    %v787 = vpop.f32.mrb[0].mxu0
    %v788 = vpop.f32.mrb[0].mxu0
    %789 = vdwg.mxu0
    %v790 = vtanh.pop %v785
    %s791 = scalar_lea.vmem [#allocation4], 20
    %v792 = vld [vmem:[%s791] sm:$0xf]
    %793 = vmatprep.subr.bf16.mxu0 0
    %794 = vmatpush1.bf16.msra.mxu0 %v196
    %795 = vmatprep.subr.bf16.mxu0 0
    %796 = vmatpush1.bf16.msra.mxu0 %v197
    %797 = vmatprep.subr.bf16.mxu0 0
    %798 = vmatpush1.bf16.msra.mxu0 %v198
    %799 = vmatprep.subr.bf16.mxu0 0
    %800 = vmatpush1.bf16.msra.mxu0 %v199
    %801 = vmatprep.subr.bf16.mxu0 0
    %802 = vmatpush1.bf16.msra.mxu0 %v200
    %803 = vmatprep.subr.bf16.mxu0 0
    %804 = vmatpush1.bf16.msra.mxu0 %v201
    %805 = vmatprep.subr.bf16.mxu0 0
    %806 = vmatpush1.bf16.msra.mxu0 %v202
    %807 = vmatprep.subr.bf16.mxu0 0
    %808 = vmatpush1.bf16.msra.mxu0 %v203
    %809 = vmatprep.subr.bf16.mxu0 0
    %810 = vmatpush1.bf16.msra.mxu0 %v204
    %811 = vmatprep.subr.bf16.mxu0 0
    %812 = vmatpush1.bf16.msra.mxu0 %v205
    %813 = vmatprep.subr.bf16.mxu0 0
    %814 = vmatpush1.bf16.msra.mxu0 %v206
    %815 = vmatprep.subr.bf16.mxu0 0
    %816 = vmatpush1.bf16.msra.mxu0 %v207
    %817 = vmatprep.subr.bf16.mxu0 0
    %818 = vmatpush1.bf16.msra.mxu0 %v208
    %819 = vmatprep.subr.bf16.mxu0 0
    %820 = vmatpush1.bf16.msra.mxu0 %v209
    %821 = vmatprep.subr.bf16.mxu0 0
    %822 = vmatpush1.bf16.msra.mxu0 %v210
    %823 = vmatprep.subr.bf16.mxu0 0
    %824 = vmatpush1.bf16.msra.mxu0 %v211
    %825 = vmatprep.mubr.bf16.mxu0 %v748
    %826 = vmatmul.mubr.bf16.gmra.mrb[0].mxu0 %v792
    %v827 = vpop.f32.mrb[0].mxu0
    %v828 = vadd.f32 %v130, %v827
    %v829 = vpop.f32.mrb[0].mxu0
    %v830 = vpop.f32.mrb[0].mxu0
    %v831 = vpop.f32.mrb[0].mxu0
    %832 = vdwg.mxu0
    %v833 = vtanh.pop %v828
    %v834 = vpack.c.bf16 %v833, %v833
    %v835 = vpack.c.bf16 %v790, %v790
    %836 = vmatprep.subr.bf16.mxu0 0
    %837 = vmatpush1.bf16.msra.mxu0 %v374
    %838 = vmatprep.subr.bf16.mxu0 0
    %839 = vmatpush1.bf16.msra.mxu0 %v375
    %840 = vmatprep.subr.bf16.mxu0 0
    %841 = vmatpush1.bf16.msra.mxu0 %v376
    %842 = vmatprep.subr.bf16.mxu0 0
    %843 = vmatpush1.bf16.msra.mxu0 %v377
    %844 = vmatprep.subr.bf16.mxu0 0
    %845 = vmatpush1.bf16.msra.mxu0 %v378
    %846 = vmatprep.subr.bf16.mxu0 0
    %847 = vmatpush1.bf16.msra.mxu0 %v379
    %848 = vmatprep.subr.bf16.mxu0 0
    %849 = vmatpush1.bf16.msra.mxu0 %v380
    %850 = vmatprep.subr.bf16.mxu0 0
    %851 = vmatpush1.bf16.msra.mxu0 %v381
    %852 = vmatprep.subr.bf16.mxu0 0
    %853 = vmatpush1.bf16.msra.mxu0 %v382
    %854 = vmatprep.subr.bf16.mxu0 0
    %855 = vmatpush1.bf16.msra.mxu0 %v383
    %856 = vmatprep.subr.bf16.mxu0 0
    %857 = vmatpush1.bf16.msra.mxu0 %v384
    %858 = vmatprep.subr.bf16.mxu0 0
    %859 = vmatpush1.bf16.msra.mxu0 %v385
    %860 = vmatprep.subr.bf16.mxu0 0
    %861 = vmatpush1.bf16.msra.mxu0 %v386
    %862 = vmatprep.subr.bf16.mxu0 0
    %863 = vmatpush1.bf16.msra.mxu0 %v387
    %864 = vmatprep.subr.bf16.mxu0 0
    %865 = vmatpush1.bf16.msra.mxu0 %v388
    %866 = vmatprep.subr.bf16.mxu0 0
    %867 = vmatpush1.bf16.msra.mxu0 %v389
    %868 = vmatprep.mubr.bf16.mxu0 %v835
    %869 = vmatmul.mubr.bf16.gmra.mrb[0].mxu0 %v834
    %v870 = vpop.f32.mrb[0].mxu0
    %v871 = vadd.f32 %v308, %v870
    %v872 = vpop.f32.mrb[0].mxu0
    %v873 = vpop.f32.mrb[0].mxu0
    %v874 = vpop.f32.mrb[0].mxu0
    %875 = vdwg.mxu0
    %v876 = vtanh.pop %v871
    %s877 = scalar_lea.vmem [#allocation4], 24
    %v878 = vld [vmem:[%s877] sm:$0xf]
    %879 = vmatprep.subr.bf16.mxu0 0
    %880 = vmatpush1.bf16.msra.mxu0 %v196
    %881 = vmatprep.subr.bf16.mxu0 0
    %882 = vmatpush1.bf16.msra.mxu0 %v197
    %883 = vmatprep.subr.bf16.mxu0 0
    %884 = vmatpush1.bf16.msra.mxu0 %v198
    %885 = vmatprep.subr.bf16.mxu0 0
    %886 = vmatpush1.bf16.msra.mxu0 %v199
    %887 = vmatprep.subr.bf16.mxu0 0
    %888 = vmatpush1.bf16.msra.mxu0 %v200
    %889 = vmatprep.subr.bf16.mxu0 0
    %890 = vmatpush1.bf16.msra.mxu0 %v201
    %891 = vmatprep.subr.bf16.mxu0 0
    %892 = vmatpush1.bf16.msra.mxu0 %v202
    %893 = vmatprep.subr.bf16.mxu0 0
    %894 = vmatpush1.bf16.msra.mxu0 %v203
    %895 = vmatprep.subr.bf16.mxu0 0
    %896 = vmatpush1.bf16.msra.mxu0 %v204
    %897 = vmatprep.subr.bf16.mxu0 0
    %898 = vmatpush1.bf16.msra.mxu0 %v205
    %899 = vmatprep.subr.bf16.mxu0 0
    %900 = vmatpush1.bf16.msra.mxu0 %v206
    %901 = vmatprep.subr.bf16.mxu0 0
    %902 = vmatpush1.bf16.msra.mxu0 %v207
    %903 = vmatprep.subr.bf16.mxu0 0
    %904 = vmatpush1.bf16.msra.mxu0 %v208
    %905 = vmatprep.subr.bf16.mxu0 0
    %906 = vmatpush1.bf16.msra.mxu0 %v209
    %907 = vmatprep.subr.bf16.mxu0 0
    %908 = vmatpush1.bf16.msra.mxu0 %v210
    %909 = vmatprep.subr.bf16.mxu0 0
    %910 = vmatpush1.bf16.msra.mxu0 %v211
    %911 = vmatprep.mubr.bf16.mxu0 %v834
    %912 = vmatmul.mubr.bf16.gmra.mrb[0].mxu0 %v878
    %v913 = vpop.f32.mrb[0].mxu0
    %v914 = vadd.f32 %v130, %v913
    %v915 = vpop.f32.mrb[0].mxu0
    %v916 = vpop.f32.mrb[0].mxu0
    %v917 = vpop.f32.mrb[0].mxu0
    %918 = vdwg.mxu0
    %v919 = vtanh.pop %v914
    %v920 = vpack.c.bf16 %v919, %v919
    %v921 = vpack.c.bf16 %v876, %v876
    %922 = vmatprep.subr.bf16.mxu0 0
    %923 = vmatpush1.bf16.msra.mxu0 %v374
    %924 = vmatprep.subr.bf16.mxu0 0
    %925 = vmatpush1.bf16.msra.mxu0 %v375
    %926 = vmatprep.subr.bf16.mxu0 0
    %927 = vmatpush1.bf16.msra.mxu0 %v376
    %928 = vmatprep.subr.bf16.mxu0 0
    %929 = vmatpush1.bf16.msra.mxu0 %v377
    %930 = vmatprep.subr.bf16.mxu0 0
    %931 = vmatpush1.bf16.msra.mxu0 %v378
    %932 = vmatprep.subr.bf16.mxu0 0
    %933 = vmatpush1.bf16.msra.mxu0 %v379
    %934 = vmatprep.subr.bf16.mxu0 0
    %935 = vmatpush1.bf16.msra.mxu0 %v380
    %936 = vmatprep.subr.bf16.mxu0 0
    %937 = vmatpush1.bf16.msra.mxu0 %v381
    %938 = vmatprep.subr.bf16.mxu0 0
    %939 = vmatpush1.bf16.msra.mxu0 %v382
    %940 = vmatprep.subr.bf16.mxu0 0
    %941 = vmatpush1.bf16.msra.mxu0 %v383
    %942 = vmatprep.subr.bf16.mxu0 0
    %943 = vmatpush1.bf16.msra.mxu0 %v384
    %944 = vmatprep.subr.bf16.mxu0 0
    %945 = vmatpush1.bf16.msra.mxu0 %v385
    %946 = vmatprep.subr.bf16.mxu0 0
    %947 = vmatpush1.bf16.msra.mxu0 %v386
    %948 = vmatprep.subr.bf16.mxu0 0
    %949 = vmatpush1.bf16.msra.mxu0 %v387
    %950 = vmatprep.subr.bf16.mxu0 0
    %951 = vmatpush1.bf16.msra.mxu0 %v388
    %952 = vmatprep.subr.bf16.mxu0 0
    %953 = vmatpush1.bf16.msra.mxu0 %v389
    %954 = vmatprep.mubr.bf16.mxu0 %v921
    %955 = vmatmul.mubr.bf16.gmra.mrb[0].mxu0 %v920
    %v956 = vpop.f32.mrb[0].mxu0
    %v957 = vadd.f32 %v308, %v956
    %v958 = vpop.f32.mrb[0].mxu0
    %v959 = vpop.f32.mrb[0].mxu0
    %v960 = vpop.f32.mrb[0].mxu0
    %961 = vdwg.mxu0
    %v962 = vtanh.pop %v957
    %s963 = scalar_lea.vmem [#allocation4], 28
    %v964 = vld [vmem:[%s963] sm:$0xf]
    %965 = vmatprep.subr.bf16.mxu0 0
    %966 = vmatpush1.bf16.msra.mxu0 %v196
    %967 = vmatprep.subr.bf16.mxu0 0
    %968 = vmatpush1.bf16.msra.mxu0 %v197
    %969 = vmatprep.subr.bf16.mxu0 0
    %970 = vmatpush1.bf16.msra.mxu0 %v198
    %971 = vmatprep.subr.bf16.mxu0 0
    %972 = vmatpush1.bf16.msra.mxu0 %v199
    %973 = vmatprep.subr.bf16.mxu0 0
    %974 = vmatpush1.bf16.msra.mxu0 %v200
    %975 = vmatprep.subr.bf16.mxu0 0
    %976 = vmatpush1.bf16.msra.mxu0 %v201
    %977 = vmatprep.subr.bf16.mxu0 0
    %978 = vmatpush1.bf16.msra.mxu0 %v202
    %979 = vmatprep.subr.bf16.mxu0 0
    %980 = vmatpush1.bf16.msra.mxu0 %v203
    %981 = vmatprep.subr.bf16.mxu0 0
    %982 = vmatpush1.bf16.msra.mxu0 %v204
    %983 = vmatprep.subr.bf16.mxu0 0
    %984 = vmatpush1.bf16.msra.mxu0 %v205
    %985 = vmatprep.subr.bf16.mxu0 0
    %986 = vmatpush1.bf16.msra.mxu0 %v206
    %987 = vmatprep.subr.bf16.mxu0 0
    %988 = vmatpush1.bf16.msra.mxu0 %v207
    %989 = vmatprep.subr.bf16.mxu0 0
    %990 = vmatpush1.bf16.msra.mxu0 %v208
    %991 = vmatprep.subr.bf16.mxu0 0
    %992 = vmatpush1.bf16.msra.mxu0 %v209
    %993 = vmatprep.subr.bf16.mxu0 0
    %994 = vmatpush1.bf16.msra.mxu0 %v210
    %995 = vmatprep.subr.bf16.mxu0 0
    %996 = vmatpush1.bf16.msra.mxu0 %v211
    %997 = vmatprep.mubr.bf16.mxu0 %v920
    %998 = vmatmul.mubr.bf16.gmra.mrb[0].mxu0 %v964
    %v999 = vpop.f32.mrb[0].mxu0
    %v1000 = vadd.f32 %v130, %v999
    %v1001 = vpop.f32.mrb[0].mxu0
    %v1002 = vpop.f32.mrb[0].mxu0
    %v1003 = vpop.f32.mrb[0].mxu0
    %1004 = vdwg.mxu0
    %v1005 = vtanh.pop %v1000
    %v1006 = vpack.c.bf16 %v1005, %v1005
    %v1007 = vpack.c.bf16 %v962, %v962
    %1008 = vmatprep.subr.bf16.mxu0 0
    %1009 = vmatpush1.bf16.msra.mxu0 %v374
    %1010 = vmatprep.subr.bf16.mxu0 0
    %1011 = vmatpush1.bf16.msra.mxu0 %v375
    %1012 = vmatprep.subr.bf16.mxu0 0
    %1013 = vmatpush1.bf16.msra.mxu0 %v376
    %1014 = vmatprep.subr.bf16.mxu0 0
    %1015 = vmatpush1.bf16.msra.mxu0 %v377
    %1016 = vmatprep.subr.bf16.mxu0 0
    %1017 = vmatpush1.bf16.msra.mxu0 %v378
    %1018 = vmatprep.subr.bf16.mxu0 0
    %1019 = vmatpush1.bf16.msra.mxu0 %v379
    %1020 = vmatprep.subr.bf16.mxu0 0
    %1021 = vmatpush1.bf16.msra.mxu0 %v380
    %1022 = vmatprep.subr.bf16.mxu0 0
    %1023 = vmatpush1.bf16.msra.mxu0 %v381
    %1024 = vmatprep.subr.bf16.mxu0 0
    %1025 = vmatpush1.bf16.msra.mxu0 %v382
    %1026 = vmatprep.subr.bf16.mxu0 0
    %1027 = vmatpush1.bf16.msra.mxu0 %v383
    %1028 = vmatprep.subr.bf16.mxu0 0
    %1029 = vmatpush1.bf16.msra.mxu0 %v384
    %1030 = vmatprep.subr.bf16.mxu0 0
    %1031 = vmatpush1.bf16.msra.mxu0 %v385
    %1032 = vmatprep.subr.bf16.mxu0 0
    %1033 = vmatpush1.bf16.msra.mxu0 %v386
    %1034 = vmatprep.subr.bf16.mxu0 0
    %1035 = vmatpush1.bf16.msra.mxu0 %v387
    %1036 = vmatprep.subr.bf16.mxu0 0
    %1037 = vmatpush1.bf16.msra.mxu0 %v388
    %1038 = vmatprep.subr.bf16.mxu0 0
    %1039 = vmatpush1.bf16.msra.mxu0 %v389
    %1040 = vmatprep.mubr.bf16.mxu0 %v1007
    %1041 = vmatmul.mubr.bf16.gmra.mrb[0].mxu0 %v1006
    %v1042 = vpop.f32.mrb[0].mxu0
    %v1043 = vadd.f32 %v308, %v1042
    %v1044 = vpop.f32.mrb[0].mxu0
    %v1045 = vpop.f32.mrb[0].mxu0
    %v1046 = vpop.f32.mrb[0].mxu0
    %1047 = vdwg.mxu0
    %v1048 = vtanh.pop %v1043
    %1049 = vst [vmem:[#allocation2] sm:$0xff] %v1005
    %1050 = vst [vmem:[#allocation3] sm:$0xff] %v1048
    // Predicated region
    $region50: #{tpu_custom_call.1} parent=1 // pred_check
      %p1051 = pneg %p83
    $region51: #{tpu_custom_call.1} parent=1 // pred_check_branch
      %1053 = sbr.rel (%p1051) target = $region53
    $region52: #{tpu_custom_call.1} parent=1 // pred_region
      %v1054 = vpack.c.bf16 %v1048, %v1048
      %v1055 = vld [vmem:[#allocation10] sm:$0xf]
      %v1056 = vld [vmem:[#allocation10 + $0x4] sm:$0xf]
      %v1057 = vld [vmem:[#allocation10 + $0x8] sm:$0xf]
      %v1058 = vld [vmem:[#allocation10 + $0xc] sm:$0xf]
      %v1059 = vld [vmem:[#allocation10 + $0x10] sm:$0xf]
      %v1060 = vld [vmem:[#allocation10 + $0x14] sm:$0xf]
      %v1061 = vld [vmem:[#allocation10 + $0x18] sm:$0xf]
      %v1062 = vld [vmem:[#allocation10 + $0x1c] sm:$0xf]
      %v1063 = vld [vmem:[#allocation10 + $0x20] sm:$0xf]
      %v1064 = vld [vmem:[#allocation10 + $0x24] sm:$0xf]
      %v1065 = vld [vmem:[#allocation10 + $0x28] sm:$0xf]
      %v1066 = vld [vmem:[#allocation10 + $0x2c] sm:$0xf]
      %v1067 = vld [vmem:[#allocation10 + $0x30] sm:$0xf]
      %v1068 = vld [vmem:[#allocation10 + $0x34] sm:$0xf]
      %v1069 = vld [vmem:[#allocation10 + $0x38] sm:$0xf]
      %v1070 = vld [vmem:[#allocation10 + $0x3c] sm:$0xf]
      %v1071 = vld [vmem:[%s6] sm:$0x1]
      %v1073 = vlaneseq
      %v1074 = vshrl.u32 %v1073, 7
      %v1075 = vsub.s32 0, %v1074
      %v1076 = vrot.slane %v1071, %v1075
      %v1094 = vunpack.c.l.b16 %v1055
      %v1095 = vunpack.c.l.b16 %v1056
      %v1096 = vunpack.c.l.b16 %v1057
      %v1097 = vunpack.c.l.b16 %v1058
      %v1098 = vunpack.c.l.b16 %v1059
      %v1099 = vunpack.c.l.b16 %v1060
      %v1100 = vunpack.c.l.b16 %v1061
      %v1101 = vunpack.c.l.b16 %v1062
      %v1102 = vunpack.c.l.b16 %v1063
      %v1103 = vunpack.c.l.b16 %v1064
      %v1104 = vunpack.c.l.b16 %v1065
      %v1105 = vunpack.c.l.b16 %v1066
      %v1106 = vunpack.c.l.b16 %v1067
      %v1107 = vunpack.c.l.b16 %v1068
      %v1108 = vunpack.c.l.b16 %v1069
      %v1109 = vunpack.c.l.b16 %v1070
      %v1110 = vpack.c.b16 %v1095, %v1094
      %v1111 = vpack.c.b16 %v1097, %v1096
      %v1112 = vpack.c.b16 %v1099, %v1098
      %v1113 = vpack.c.b16 %v1101, %v1100
      %v1114 = vpack.c.b16 %v1103, %v1102
      %v1115 = vpack.c.b16 %v1105, %v1104
      %v1116 = vpack.c.b16 %v1107, %v1106
      %v1117 = vpack.c.b16 %v1109, %v1108
      %1126 = vmatprep.subr.bf16.mxu0 0
      %1127 = vmatpush1.bf16.msra.mxu0 %v1110
      %1128 = vmatprep.subr.bf16.mxu0 0
      %1129 = vmatpush1.bf16.msra.mxu0 %v1111
      %1130 = vmatprep.subr.bf16.mxu0 0
      %1131 = vmatpush1.bf16.msra.mxu0 %v1112
      %1132 = vmatprep.subr.bf16.mxu0 0
      %1133 = vmatpush1.bf16.msra.mxu0 %v1113
      %1134 = vmatprep.subr.bf16.mxu0 0
      %1135 = vmatpush1.bf16.msra.mxu0 %v1114
      %1136 = vmatprep.subr.bf16.mxu0 0
      %1137 = vmatpush1.bf16.msra.mxu0 %v1115
      %1138 = vmatprep.subr.bf16.mxu0 0
      %1139 = vmatpush1.bf16.msra.mxu0 %v1116
      %1140 = vmatprep.subr.bf16.mxu0 0
      %1141 = vmatpush1.bf16.msra.mxu0 %v1117
      %1142 = vmatprep.subr.bf16.mxu0 0
      %1143 = vmatpush1.bf16.msra.mxu0 0
      %1144 = vmatprep.subr.bf16.mxu0 0
      %1145 = vmatpush1.bf16.msra.mxu0 0
      %1146 = vmatprep.subr.bf16.mxu0 0
      %1147 = vmatpush1.bf16.msra.mxu0 0
      %1148 = vmatprep.subr.bf16.mxu0 0
      %1149 = vmatpush1.bf16.msra.mxu0 0
      %1150 = vmatprep.subr.bf16.mxu0 0
      %1151 = vmatpush1.bf16.msra.mxu0 0
      %1152 = vmatprep.subr.bf16.mxu0 0
      %1153 = vmatpush1.bf16.msra.mxu0 0
      %1154 = vmatprep.subr.bf16.mxu0 0
      %1155 = vmatpush1.bf16.msra.mxu0 0
      %1156 = vmatprep.subr.bf16.mxu0 0
      %1157 = vmatpush1.bf16.msra.mxu0 0
      %1158 = vmatprep.mubr.bf16.mxu0 0
      %1159 = vmatmul.mubr.bf16.gmra.mrb[0].mxu0 %v1054
      %v1160 = vpop.f32.mrb[0].mxu0
      %v1161 = vadd.f32 %v1076, %v1160
      %v1162 = vpop.f32.mrb[0].mxu0
      %v1163 = vpop.f32.mrb[0].mxu0
      %v1164 = vpop.f32.mrb[0].mxu0
      %1165 = vdwg.mxu0
      %1166 = vst [vmem:[#allocation12] sm:$0xff] %v1161
    $region53: #{tpu_custom_call.1} parent=1 // pred_fallthru
      _
    // Predicated region
    $region54: #{tpu_custom_call.1} parent=1 // pred_check
      _
    $region55: #{tpu_custom_call.1} parent=1 // pred_check_branch
      %1168 = sbr.rel (0) target = $region57
    $region56: #{tpu_custom_call.1} parent=1 // pred_region
      %s1170 = ssub.s32 128, 128
      %1171 = vsyncadd [#allocation6], %s1170
      %s1173 = sshll.u32 [#allocation12], 4
      %s1174 = int_to_ptr.vmem [resolvable:$true] %s1173
      %1176 = dma.vmem_to_hbm [thread:$0]  %s1174, 128, %s7, [#allocation6]
    $region57: #{tpu_custom_call.1} parent=1 // pred_fallthru
      _
    // Predicated region
    $region58: #{tpu_custom_call.1} parent=1 // pred_check
      _
    $region59: #{tpu_custom_call.1} parent=1 // pred_check_branch
      %1178 = sbr.rel (0) target = $region61
    $region60: #{tpu_custom_call.1} parent=1 // pred_region
      %1179 = dma.done [#allocation6], 128
    $region61: #{tpu_custom_call.1} parent=1 // pred_fallthru
      _
    %1180 = vsyncpa [#allocation5], 1
    %1181 = vsyncpa [#allocation8], 1
    %1182 = vsyncpa [#allocation11], 1
    %1183 = vsyncpa [#allocation6], 1

</llo_original>
